<compile_context>
chip_gen: v5e
topology: v5e:2x2
jax: 0.10.0
libtpu: 0.0.40
codegen_flags: <defaults>
</compile_context>

<pallas_src>
import math
import numpy as np

import jax
import jax.numpy as jnp
from jax.experimental import pallas as pl
from jax.experimental.pallas import tpu as pltpu

# Nodes per grid step (MXU contraction tile). Multiple of 256 (v6e MXU depth),
# and small enough to respect v7x's 64 MiB VMEM together with the bin-x tiling.
NODE_TILE = 512
_VMEM_LIMIT = 64 * 1024 * 1024


# ----------------------------------------------------------------------------
# Gaussian kernels (2-D for the reference, separable 1-D for the TPU path)
# ----------------------------------------------------------------------------
def gaussian_kernel_np(sigma, truncate=4.0):
    sigma = float(sigma)
    radius = int(truncate * sigma + 0.5)
    x, y = np.mgrid[-radius:radius + 1, -radius:radius + 1]
    s2 = sigma ** 2
    k = 2 * np.exp(-0.5 * (x ** 2 + y ** 2) / s2)
    k = k / np.sum(k)
    return k.astype(np.float32)


def gaussian_kernel_1d_np(sigma, truncate=4.0):
    # The module's 2-D kernel factorizes exactly into outer(g1d, g1d).
    sigma = float(sigma)
    radius = int(truncate * sigma + 0.5)
    x = np.arange(-radius, radius + 1, dtype=np.float64)
    g = np.exp(-0.5 * x * x / sigma ** 2)
    g = g / g.sum()
    return g.astype(np.float32)


def _pick_tile(n, candidates):
    for t in candidates:
        if n % t == 0 and n >= t:
            return t
    return n


def _pick_bx_tile(nbx):
    # Tile bin-x so v7x's two TensorCores can split blocks and the resident
    # dmap/init blocks stay small.  Must be a multiple of 128 (it is also the
    # lane width of the bin-center-x block) or the full extent.
    for t in (512, 256, 128):
        if nbx % t == 0 and nbx // t >= 2:
            return t
    return nbx


# ----------------------------------------------------------------------------
# Pallas kernel 1: movable+filler bell-shaped density accumulation + cost
# ----------------------------------------------------------------------------
def _make_density_cost_kernel(target_area, bin_size_x, bin_size_y,
                              nbx, nby, bx_tile, padding, scale_on_y):
    def bell(coord, size, a, b, centers, bin_size):
        # coord/size/a/b: (NT, 1); centers: (1, B)
        d = jnp.abs(coord + 0.5 * size - centers)
        half = 0.5 * size
        inner = 1.0 - a * d * d
        s = d - half - 2.0 * bin_size
        outer = b * s * s
        return jnp.where(d <= half + bin_size, inner,
                         jnp.where(d <= half + 2.0 * bin_size, outer, 0.0))

    def kernel(feat_ref, bcx_ref, bcy_ref, init_ref, dmap_ref, cost_ref):
        bi = pl.program_id(0)        # bin-x block   ("parallel")
        i = pl.program_id(1)         # node tile     ("arbitrary" reduction)

        @pl.when(i == 0)
        def _init():
            dmap_ref[...] = jnp.zeros_like(dmap_ref)

        f = feat_ref[...]                     # (NT, 10) f32
        x, y = f[:, 0:1], f[:, 1:2]
        w, h = f[:, 2:3], f[:, 3:4]
        ax_, bx_, cx_ = f[:, 4:5], f[:, 5:6], f[:, 6:7]
        ay_, by_, cy_ = f[:, 7:8], f[:, 8:9], f[:, 9:10]
        # Padded tail rows are all-zero -> cx_*cy_ == 0 -> zero contribution.
        scale = cx_ * cy_

        px = bell(x, w, ax_, bx_, bcx_ref[...], bin_size_x)   # (NT, bx_tile)
        py = bell(y, h, ay_, by_, bcy_ref[...], bin_size_y)   # (NT, nby)
        if scale_on_y:
            py = py * scale      # fold rank-1 scale into the narrower matrix
        else:
            px = px * scale

        # Single-pass bf16 MXU matmul, f32 accumulation over the node axis:
        # (NT, Bx)^T @ (NT, By) -> (Bx, By)
        dmap_ref[...] += jax.lax.dot_general(
            px.astype(jnp.bfloat16), py.astype(jnp.bfloat16),
            (((0,), (0,)), ((), ())),
            preferred_element_type=jnp.float32)

        @pl.when(i == pl.num_programs(1) - 1)
        def _finalize():
            dm = dmap_ref[...] + init_ref[...]
            dmap_ref[...] = dm
            if padding > 0:
                rows = bi * bx_tile + jax.lax.broadcasted_iota(
                    jnp.int32, (bx_tile, nby), 0)
                cols = jax.lax.broadcasted_iota(jnp.int32, (bx_tile, nby), 1)
                pad_mask = ((rows < padding) | (rows >= nbx - padding) |
                            (cols < padding) | (cols >= nby - padding))
                dm = jnp.where(pad_mask, target_area, dm)
            delta = dm - target_area
            cost_ref[...] = jnp.sum(delta * delta)[None, None, None]

    return kernel


def density_cost_pallas(feat, bin_center_x, bin_center_y, init_map,
                        target_area, bin_size_x, bin_size_y, padding):
    nbx, nby = init_map.shape
    p, nfeat = feat.shape
    bx_tile = _pick_bx_tile(nbx)
    n_bx = nbx // bx_tile
    n_nt = p // NODE_TILE
    scale_on_y = nby <= nbx

    kernel = _make_density_cost_kernel(
        target_area, bin_size_x, bin_size_y, nbx, nby, bx_tile, padding,
        scale_on_y)

    dmap, cost_parts = pl.pallas_call(
        kernel,
        out_shape=(jax.ShapeDtypeStruct((nbx, nby), jnp.float32),
                   jax.ShapeDtypeStruct((n_bx, 1, 1), jnp.float32)),
        grid_spec=pltpu.PrefetchScalarGridSpec(
            num_scalar_prefetch=0,
            grid=(n_bx, n_nt),
            in_specs=[pl.BlockSpec((NODE_TILE, nfeat), lambda bi, i: (i, 0)),
                      pl.BlockSpec((1, bx_tile), lambda bi, i: (0, bi)),
                      pl.BlockSpec((1, nby), lambda bi, i: (0, 0)),
                      pl.BlockSpec((bx_tile, nby), lambda bi, i: (bi, 0))],
            out_specs=[pl.BlockSpec((bx_tile, nby), lambda bi, i: (bi, 0)),
                       pl.BlockSpec((1, 1, 1), lambda bi, i: (bi, 0, 0))]),
        compiler_params=pltpu.CompilerParams(
            dimension_semantics=("parallel", "arbitrary"),
            vmem_limit_bytes=_VMEM_LIMIT),
    )(feat,
      bin_center_x.reshape(1, -1), bin_center_y.reshape(1, -1),
      init_map)
    return jnp.sum(cost_parts), dmap


# ----------------------------------------------------------------------------
# Pallas kernel 2: fixed-cell (terminal) overlap density map (runs once)
# ----------------------------------------------------------------------------
def _make_fixed_overlap_kernel(bin_size_x, bin_size_y):
    def kernel(feat_ref, bxl_ref, byl_ref, omap_ref):
        i = pl.program_id(0)

        @pl.when(i == 0)
        def _init():
            omap_ref[...] = jnp.zeros_like(omap_ref)

        f = feat_ref[...]                     # (NT, 4)
        x, y = f[:, 0:1], f[:, 1:2]
        w, h = f[:, 2:3], f[:, 3:4]
        bxl = bxl_ref[...]                    # (1, Bx) lower bin edges
        byl = byl_ref[...]                    # (1, By)

        # Padded tail rows (x=y=w=h=0) yield zero overlap after the clamp.
        ox = jnp.maximum(
            jnp.minimum(x + w, bxl + bin_size_x) - jnp.maximum(x, bxl), 0.0)
        oy = jnp.maximum(
            jnp.minimum(y + h, byl + bin_size_y) - jnp.maximum(y, byl), 0.0)

        omap_ref[...] += jax.lax.dot_general(
            ox.astype(jnp.bfloat16), oy.astype(jnp.bfloat16),
            (((0,), (0,)), ((), ())),
            preferred_element_type=jnp.float32)

    return kernel


def fixed_density_map_pallas(feat, bin_lo_x, bin_lo_y, nbx, nby,
                             bin_size_x, bin_size_y):
    p, nfeat = feat.shape
    grid = (p // NODE_TILE,)
    kernel = _make_fixed_overlap_kernel(bin_size_x, bin_size_y)
    # Init-only kernel; bin-x tiling is skipped here (runs once per placement).
    return pl.pallas_call(
        kernel,
        out_shape=jax.ShapeDtypeStruct((nbx, nby), jnp.float32),
        grid_spec=pltpu.PrefetchScalarGridSpec(
            num_scalar_prefetch=0,
            grid=grid,
            in_specs=[pl.BlockSpec((NODE_TILE, nfeat), lambda i: (i, 0)),
                      pl.BlockSpec((1, nbx), lambda i: (0, 0)),
                      pl.BlockSpec((1, nby), lambda i: (0, 0))],
            out_specs=pl.BlockSpec((nbx, nby), lambda i: (0, 0))),
        compiler_params=pltpu.CompilerParams(
            dimension_semantics=("arbitrary",),
            vmem_limit_bytes=_VMEM_LIMIT),
    )(feat, bin_lo_x.reshape(1, -1), bin_lo_y.reshape(1, -1))


# ----------------------------------------------------------------------------
# Pallas kernel 3: separable Gaussian "same" smoothing (two tiled 1-D passes)
# ----------------------------------------------------------------------------
def _make_conv1d_lane_kernel(taps, n_out):
    tap_vals = [float(t) for t in taps]

    def kernel(xpad_ref, out_ref):
        acc = tap_vals[0] * xpad_ref[:, 0:n_out]
        for j in range(1, len(tap_vals)):
            acc = acc + tap_vals[j] * xpad_ref[:, j:j + n_out]
        out_ref[...] = acc

    return kernel


def _make_conv1d_sublane_kernel(taps, n_out):
    tap_vals = [float(t) for t in taps]

    def kernel(xpad_ref, out_ref):
        acc = tap_vals[0] * xpad_ref[0:n_out, :]
        for j in range(1, len(tap_vals)):
            acc = acc + tap_vals[j] * xpad_ref[j:j + n_out, :]
        out_ref[...] = acc

    return kernel


def gaussian_smooth_pallas(dmap, g1d):
    nbx, nby = dmap.shape
    r = g1d.shape[0] // 2

    # pass 1: convolve along y (lanes); tile over rows, no halo needed in x.
    xpad_y = jnp.pad(dmap, ((0, 0), (r, r)))
    row_tile = _pick_tile(nbx, (512, 256, 128, 64, 32, 16, 8))
    out_y = pl.pallas_call(
        _make_conv1d_lane_kernel(g1d, nby),
        out_shape=jax.ShapeDtypeStruct((nbx, nby), jnp.float32),
        grid=(nbx // row_tile,),
        in_specs=[pl.BlockSpec((row_tile, nby + 2 * r), lambda i: (i, 0))],
        out_specs=pl.BlockSpec((row_tile, nby), lambda i: (i, 0)),
        compiler_params=pltpu.CompilerParams(
            dimension_semantics=("parallel",)),
    )(xpad_y)

    # pass 2: convolve along x (sublanes); tile over columns.
    xpad_x = jnp.pad(out_y, ((r, r), (0, 0)))
    col_tile = _pick_tile(nby, (512, 256, 128))
    out = pl.pallas_call(
        _make_conv1d_sublane_kernel(g1d, nbx),
        out_shape=jax.ShapeDtypeStruct((nbx, nby), jnp.float32),
        grid=(nby // col_tile,),
        in_specs=[pl.BlockSpec((nbx + 2 * r, col_tile), lambda i: (0, i))],
        out_specs=pl.BlockSpec((nbx, col_tile), lambda i: (0, i)),
        compiler_params=pltpu.CompilerParams(
            dimension_semantics=("parallel",)),
    )(xpad_x)
    return out


# ----------------------------------------------------------------------------
# Module wrapper mirroring DensityPotential
# ----------------------------------------------------------------------------
class DensityPotentialPallas:
    def __init__(self, node_size_x, node_size_y, ax, bx, cx, ay, by, cy,
                 bin_center_x, bin_center_y, target_density, xl, yl, xh, yh,
                 bin_size_x, bin_size_y, num_movable_nodes, num_terminals,
                 num_filler_nodes, padding, sigma, delta):
        self.node_size_x = node_size_x
        self.node_size_y = node_size_y
        self.ax, self.bx, self.cx = ax, bx, cx
        self.ay, self.by, self.cy = ay, by, cy
        self.bin_center_x = bin_center_x
        self.bin_center_y = bin_center_y
        self.target_density = float(target_density)
        self.xl, self.yl, self.xh, self.yh = xl, yl, xh, yh
        self.bin_size_x = float(bin_size_x)
        self.bin_size_y = float(bin_size_y)
        self.num_movable_nodes = num_movable_nodes
        self.num_terminals = num_terminals
        self.num_filler_nodes = num_filler_nodes
        self.padding = int(padding)
        self.sigma = sigma
        self.delta = delta  # TODO(synk): delta is used inside the C++ fixed_density_map; approximated here by the Gaussian smoothing path.
        self.num_bins_x = int(math.ceil((xh - xl) / bin_size_x))
        self.num_bins_y = int(math.ceil((yh - yl) / bin_size_y))
        self.initial_density_map = None
        self.density_map = None

    def _pad_nodes(self, arr2d):
        n = arr2d.shape[0]
        p = ((n + NODE_TILE - 1) // NODE_TILE) * NODE_TILE
        p = max(p, NODE_TILE)
        return jnp.pad(arr2d, ((0, p - n), (0, 0)))

    def forward(self, pos):
        num_nodes = self.node_size_x.shape[0]
        x = pos[:num_nodes]
        y = pos[num_nodes:]
        bin_area = self.bin_size_x * self.bin_size_y

        if self.initial_density_map is None:
            if self.num_terminals == 0:
                self.initial_density_map = jnp.zeros(
                    (self.num_bins_x, self.num_bins_y), jnp.float32)
            else:
                t0 = self.num_movable_nodes
                t1 = self.num_movable_nodes + self.num_terminals
                tidx = np.arange(t0, t1)
                feat_fix = jnp.stack(
                    [x[tidx], y[tidx],
                     self.node_size_x[tidx], self.node_size_y[tidx]], axis=1)
                feat_fix = self._pad_nodes(feat_fix)
                bin_lo_x = self.bin_center_x - 0.5 * self.bin_size_x
                bin_lo_y = self.bin_center_y - 0.5 * self.bin_size_y
                init_map = fixed_density_map_pallas(
                    feat_fix, bin_lo_x, bin_lo_y,
                    self.num_bins_x, self.num_bins_y,
                    self.bin_size_x, self.bin_size_y)
                if self.num_movable_nodes + self.num_filler_nodes < num_nodes:
                    init_map = init_map / bin_area
                    g1 = jnp.asarray(gaussian_kernel_1d_np(self.sigma))
                    init_map = gaussian_smooth_pallas(init_map, np.asarray(g1))
                    init_map = init_map * bin_area
                self.initial_density_map = init_map

        # movable + filler nodes
        midx = np.concatenate(
            [np.arange(0, self.num_movable_nodes),
             np.arange(num_nodes - self.num_filler_nodes, num_nodes)])
        feat = jnp.stack(
            [x[midx], y[midx],
             self.node_size_x[midx], self.node_size_y[midx],
             self.ax[midx], self.bx[midx], self.cx[midx],
             self.ay[midx], self.by[midx], self.cy[midx]], axis=1)
        feat = self._pad_nodes(feat)

        target_area = self.target_density * bin_area
        cost, dmap = density_cost_pallas(
            feat, self.bin_center_x, self.bin_center_y,
            self.initial_density_map,
            target_area, self.bin_size_x, self.bin_size_y, self.padding)
        self.density_map = dmap
        return cost


# ----------------------------------------------------------------------------
# Pure-numpy (float64) reference of the same math
# ----------------------------------------------------------------------------
def _bell_np(coord, size, a, b, centers, bin_size):
    d = np.abs(coord + 0.5 * size - centers)
    half = 0.5 * size
    inner = 1.0 - a * d * d
    s = d - half - 2.0 * bin_size
    outer = b * s * s
    return np.where(d <= half + bin_size, inner,
                    np.where(d <= half + 2.0 * bin_size, outer, 0.0))


def reference_forward(pos, nsx, nsy, ax, bx, cx, ay, by, cy, bcx, bcy,
                      target_density, bin_size_x, bin_size_y,
                      num_movable, num_terminals, num_filler, padding,
                      nbx, nby, sigma):
    num_nodes = nsx.shape[0]
    x, y = pos[:num_nodes], pos[num_nodes:]
    bin_area = bin_size_x * bin_size_y
    bin_lo_x = bcx - 0.5 * bin_size_x
    bin_lo_y = bcy - 0.5 * bin_size_y

    init_map = np.zeros((nbx, nby))
    if num_terminals > 0:
        for t in range(num_movable, num_movable + num_terminals):
            ox = np.maximum(np.minimum(x[t] + nsx[t], bin_lo_x + bin_size_x)
                            - np.maximum(x[t], bin_lo_x), 0.0)
            oy = np.maximum(np.minimum(y[t] + nsy[t], bin_lo_y + bin_size_y)
                            - np.maximum(y[t], bin_lo_y), 0.0)
            init_map += np.outer(ox, oy)
        if num_movable + num_filler < num_nodes:
            init_map = init_map / bin_area
            gw = gaussian_kernel_np(sigma).astype(np.float64)
            r0, r1 = gw.shape[0] // 2, gw.shape[1] // 2
            pad = np.pad(init_map, ((r0, r0), (r1, r1)))
            sm = np.zeros_like(init_map)
            for di in range(gw.shape[0]):
                for dj in range(gw.shape[1]):
                    sm += gw[di, dj] * pad[di:di + nbx, dj:dj + nby]
            init_map = sm * bin_area

    dmap = init_map.copy()
    midx = np.concatenate([np.arange(0, num_movable),
                           np.arange(num_nodes - num_filler, num_nodes)])
    for i in midx:
        px = _bell_np(x[i], nsx[i], ax[i], bx[i], bcx, bin_size_x)
        py = _bell_np(y[i], nsy[i], ay[i], by[i], bcy, bin_size_y)
        dmap += cx[i] * cy[i] * np.outer(px, py)

    mask = np.zeros((nbx, nby), bool)
    if padding > 0:
        mask[:, :] = True
        mask[padding:nbx - padding, padding:nby - padding] = False
    target_area = target_density * bin_area
    dm = np.where(mask, target_area, dmap)
    return float(np.sum((dm - target_area) ** 2))


# ----------------------------------------------------------------------------
# Main
# ----------------------------------------------------------------------------
if __name__ == "__main__":
    key = jax.random.PRNGKey(0)

    num_movable, num_terminals, num_filler = 48, 8, 8
    num_nodes = num_movable + num_terminals + num_filler
    xl = yl = 0.0
    xh = yh = 16.0
    bin_size_x = bin_size_y = 1.0
    nbx = nby = 16
    target_density = 0.9
    padding = 1
    sigma, delta = 1.0, 2.0

    k1, k2, k3, k4 = jax.random.split(key, 4)
    node_size_x = jax.random.uniform(k1, (num_nodes,), jnp.float32, 0.5, 2.0)
    node_size_y = jax.random.uniform(k2, (num_nodes,), jnp.float32, 0.5, 2.0)
    px_pos = jax.random.uniform(k3, (num_nodes,), jnp.float32) * (xh - xl - node_size_x) + xl
    py_pos = jax.random.uniform(k4, (num_nodes,), jnp.float32) * (yh - yl - node_size_y) + yl
    pos = jnp.concatenate([px_pos, py_pos]).astype(jnp.float32)

    # NTUPlace3 bell-shaped-potential coefficients (deterministic setup)
    ax = 4.0 / ((node_size_x + 2.0 * bin_size_x) * (node_size_x + 4.0 * bin_size_x))
    bx = 2.0 / (bin_size_x * (node_size_x + 4.0 * bin_size_x))
    ay = 4.0 / ((node_size_y + 2.0 * bin_size_y) * (node_size_y + 4.0 * bin_size_y))
    by = 2.0 / (bin_size_y * (node_size_y + 4.0 * bin_size_y))
    cx = node_size_x / (node_size_x + 4.0 * bin_size_x)
    cy = node_size_y / (node_size_y + 4.0 * bin_size_y)

    bin_center_x = (xl + (jnp.arange(nbx, dtype=jnp.float32) + 0.5) * bin_size_x)
    bin_center_y = (yl + (jnp.arange(nby, dtype=jnp.float32) + 0.5) * bin_size_y)

    dp = DensityPotentialPallas(
        node_size_x, node_size_y, ax, bx, cx, ay, by, cy,
        bin_center_x, bin_center_y, target_density, xl, yl, xh, yh,
        bin_size_x, bin_size_y, num_movable, num_terminals, num_filler,
        padding, sigma, delta)

    cost = dp.forward(pos)
    cost = jax.block_until_ready(cost)

    ref_cost = reference_forward(
        np.asarray(pos, np.float64), np.asarray(node_size_x, np.float64),
        np.asarray(node_size_y, np.float64),
        np.asarray(ax, np.float64), np.asarray(bx, np.float64), np.asarray(cx, np.float64),
        np.asarray(ay, np.float64), np.asarray(by, np.float64), np.asarray(cy, np.float64),
        np.asarray(bin_center_x, np.float64), np.asarray(bin_center_y, np.float64),
        target_density, bin_size_x, bin_size_y,
        num_movable, num_terminals, num_filler, padding, nbx, nby, sigma)

    # bf16 MXU inputs with f32 accumulation: tolerance widened accordingly.
    np.testing.assert_allclose(float(cost), ref_cost, rtol=2e-2, atol=2e-2)
    print("KERNEL_OK")
</pallas_src>

<mosaic_0001>
module attributes {stable_mosaic.version = 11 : i64} {
  func.func @kernel(%arg0: i32, %arg1: memref<512x4xf32, #tpu.memory_space<vmem>>, %arg2: memref<1x16xf32, #tpu.memory_space<vmem>>, %arg3: memref<1x16xf32, #tpu.memory_space<vmem>>, %arg4: memref<16x16xf32, #tpu.memory_space<vmem>>) attributes {dimension_semantics = [#tpu.dimension_semantics<arbitrary>], iteration_bounds = array<i64: 1>, scalar_prefetch = 0 : i64, scratch_operands = 0 : i64, tpu.core_type = #tpu.core_type<tc>, window_params = [{transform_indices = @transform_0, window_bounds = array<i64: 512, 4>}, {pipeline_mode = #tpu.pipeline_mode<synchronous>, transform_indices = @transform_1, window_bounds = array<i64: 1, 16>}, {pipeline_mode = #tpu.pipeline_mode<synchronous>, transform_indices = @transform_2, window_bounds = array<i64: 1, 16>}, {pipeline_mode = #tpu.pipeline_mode<synchronous>, transform_indices = @transform_3, window_bounds = array<i64: 16, 16>}]} {
    %c0_i32 = arith.constant 0 : i32
    %0 = arith.cmpi eq, %arg0, %c0_i32 : i32
    %1 = arith.extui %0 : i1 to i32
    %c0_i32_0 = arith.constant 0 : i32
    %2 = arith.cmpi ne, %1, %c0_i32_0 : i32
    scf.if %2 {
      %cst_14 = arith.constant 0.000000e+00 : f32
      %40 = vector.broadcast %cst_14 : f32 to vector<16x16xf32>
      %c0_15 = arith.constant 0 : index
      %c0_16 = arith.constant 0 : index
      %41 = vector.load %arg4[%c0_15, %c0_16] : memref<16x16xf32, #tpu.memory_space<vmem>>, vector<16x16xf32>
      tpu.vector_store %arg4[%c0_15, %c0_16], %40 {strides = array<i32>} : memref<16x16xf32, #tpu.memory_space<vmem>>, vector<16x16xf32>,
    } else {
    }
    %c0 = arith.constant 0 : index
    %c0_1 = arith.constant 0 : index
    %3 = vector.load %arg1[%c0, %c0_1] : memref<512x4xf32, #tpu.memory_space<vmem>>, vector<512x4xf32>
    %4 = vector.extract_strided_slice %3 {offsets = [0, 0], sizes = [512, 1], strides = [1, 1]} : vector<512x4xf32> to vector<512x1xf32>
    %5 = vector.extract_strided_slice %3 {offsets = [0, 1], sizes = [512, 1], strides = [1, 1]} : vector<512x4xf32> to vector<512x1xf32>
    %6 = vector.extract_strided_slice %3 {offsets = [0, 2], sizes = [512, 1], strides = [1, 1]} : vector<512x4xf32> to vector<512x1xf32>
    %7 = vector.extract_strided_slice %3 {offsets = [0, 3], sizes = [512, 1], strides = [1, 1]} : vector<512x4xf32> to vector<512x1xf32>
    %c0_2 = arith.constant 0 : index
    %c0_3 = arith.constant 0 : index
    %8 = vector.load %arg2[%c0_2, %c0_3] : memref<1x16xf32, #tpu.memory_space<vmem>>, vector<1x16xf32>
    %c0_4 = arith.constant 0 : index
    %c0_5 = arith.constant 0 : index
    %9 = vector.load %arg3[%c0_4, %c0_5] : memref<1x16xf32, #tpu.memory_space<vmem>>, vector<1x16xf32>
    %10 = arith.addf %4, %6 : vector<512x1xf32>
    %cst = arith.constant 1.000000e+00 : f32
    %11 = vector.broadcast %cst : f32 to vector<1x16xf32>
    %12 = arith.addf %8, %11 : vector<1x16xf32>
    %13 = vector.broadcast %10 : vector<512x1xf32> to vector<512x16xf32>
    %14 = vector.broadcast %12 : vector<1x16xf32> to vector<512x16xf32>
    %15 = arith.minimumf %13, %14 : vector<512x16xf32>
    %16 = vector.broadcast %4 : vector<512x1xf32> to vector<512x16xf32>
    %17 = vector.broadcast %8 : vector<1x16xf32> to vector<512x16xf32>
    %18 = arith.maximumf %16, %17 : vector<512x16xf32>
    %19 = arith.subf %15, %18 : vector<512x16xf32>
    %cst_6 = arith.constant 0.000000e+00 : f32
    %20 = vector.broadcast %cst_6 : f32 to vector<512x16xf32>
    %21 = arith.maximumf %19, %20 : vector<512x16xf32>
    %22 = arith.addf %5, %7 : vector<512x1xf32>
    %cst_7 = arith.constant 1.000000e+00 : f32
    %23 = vector.broadcast %cst_7 : f32 to vector<1x16xf32>
    %24 = arith.addf %9, %23 : vector<1x16xf32>
    %25 = vector.broadcast %22 : vector<512x1xf32> to vector<512x16xf32>
    %26 = vector.broadcast %24 : vector<1x16xf32> to vector<512x16xf32>
    %27 = arith.minimumf %25, %26 : vector<512x16xf32>
    %28 = vector.broadcast %5 : vector<512x1xf32> to vector<512x16xf32>
    %29 = vector.broadcast %9 : vector<1x16xf32> to vector<512x16xf32>
    %30 = arith.maximumf %28, %29 : vector<512x16xf32>
    %31 = arith.subf %27, %30 : vector<512x16xf32>
    %cst_8 = arith.constant 0.000000e+00 : f32
    %32 = vector.broadcast %cst_8 : f32 to vector<512x16xf32>
    %33 = arith.maximumf %31, %32 : vector<512x16xf32>
    %c0_9 = arith.constant 0 : index
    %c0_10 = arith.constant 0 : index
    %34 = vector.load %arg4[%c0_9, %c0_10] : memref<16x16xf32, #tpu.memory_space<vmem>>, vector<16x16xf32>
    %35 = arith.truncf %21 : vector<512x16xf32> to vector<512x16xbf16>
    %36 = arith.truncf %33 : vector<512x16xf32> to vector<512x16xbf16>
    %cst_11 = arith.constant dense<0.000000e+00> : vector<16x16xf32>
    %37 = tpu.matmul %35, %36, %cst_11 {dimension_numbers = #tpu.dot_dimension_numbers<[0], [0], [1], [1], [0, 1, 1, 1], [], []>} : vector<512x16xbf16>, vector<512x16xbf16>, vector<16x16xf32> -> vector<16x16xf32>
    %38 = arith.addf %34, %37 : vector<16x16xf32>
    %c0_12 = arith.constant 0 : index
    %c0_13 = arith.constant 0 : index
    %39 = vector.load %arg4[%c0_12, %c0_13] : memref<16x16xf32, #tpu.memory_space<vmem>>, vector<16x16xf32>
    tpu.vector_store %arg4[%c0_12, %c0_13], %38 {strides = array<i32>} : memref<16x16xf32, #tpu.memory_space<vmem>>, vector<16x16xf32>,
    return
  }
  func.func @transform_0(%arg0: i32) -> (i32, i32) {
    %c0_i32 = arith.constant 0 : i32
    %c0_i32_0 = arith.constant 0 : i32
    return %arg0, %c0_i32 : i32, i32
  }
  func.func @transform_1(%arg0: i32) -> (i32, i32) {
    %c0_i32 = arith.constant 0 : i32
    %c0_i32_0 = arith.constant 0 : i32
    %c0_i32_1 = arith.constant 0 : i32
    return %c0_i32, %c0_i32_0 : i32, i32
  }
  func.func @transform_2(%arg0: i32) -> (i32, i32) {
    %c0_i32 = arith.constant 0 : i32
    %c0_i32_0 = arith.constant 0 : i32
    %c0_i32_1 = arith.constant 0 : i32
    return %c0_i32, %c0_i32_0 : i32, i32
  }
  func.func @transform_3(%arg0: i32) -> (i32, i32) {
    %c0_i32 = arith.constant 0 : i32
    %c0_i32_0 = arith.constant 0 : i32
    %c0_i32_1 = arith.constant 0 : i32
    return %c0_i32, %c0_i32_0 : i32, i32
  }
}

</mosaic_0001>

<llo_original>
// kernel: tpu_custom_call.1
$region0: #{tpu_custom_call.1}
  #allocation0 [shape = 'u32[]', space=smem, size = 0x4, offset = 0x4, fixed_abs, tag = 'smem constant byte address 0x4 - core index']
  #allocation1 [shape = 'u32[72,128]{1,0:T(1,128)}', space=vmem, size = 0x9000, scoped, tag = 'internal scratch']
  %s0 = inlined_call_operand.vmem [shape: f32[512,4], index: 0, kind: input, shape index: {}]
  %s1 = inlined_call_operand.vmem [shape: f32[1,16], index: 1, kind: input, shape index: {}]
  %s2 = inlined_call_operand.vmem [shape: f32[1,16], index: 2, kind: input, shape index: {}]
  %s3 = inlined_call_operand.hbm [shape: f32[16,16], index: 3, kind: output, shape index: {}]
  %s4 = sld [smem:[#allocation0]]
  $region26: #{tpu_custom_call.1} parent=0
    _
  %s6 = ssub.s32 1, %s4
  %s7 = scalar_select 0, %s6, %s4
  $region1: #{tpu_custom_call.1} parent=0
    #allocation2 [shape = 'u8[8192]{0}', space=vmem, size = 0x2000, scoped, tag = 'output window, operand 0, single buffered']
    #allocation3 [shape = 's32[1]{0}', space=sflag, size = 0x4, scoped, tag = 'scoped memory for tpu_custom_call.1']
    %8 = vsyncpa [#allocation3], 0
    // Predicated region
    $region2: #{tpu_custom_call.1} parent=1 // pred_check
      _
    $region3: #{tpu_custom_call.1} parent=1 // pred_check_branch
      %10 = sbr.rel (0) target = $region5
    $region4: #{tpu_custom_call.1} parent=1 // pred_region
      _
    $region5: #{tpu_custom_call.1} parent=1 // pred_fallthru
      _
    // Predicated region
    $region6: #{tpu_custom_call.1} parent=1 // pred_check
      _
    $region7: #{tpu_custom_call.1} parent=1 // pred_check_branch
      %12 = sbr.rel (0) target = $region9
    $region8: #{tpu_custom_call.1} parent=1 // pred_region
      _
    $region9: #{tpu_custom_call.1} parent=1 // pred_fallthru
      _
    // Predicated region
    $region10: #{tpu_custom_call.1} parent=1 // pred_check
      _
    $region11: #{tpu_custom_call.1} parent=1 // pred_check_branch
      %14 = sbr.rel (0) target = $region13
    $region12: #{tpu_custom_call.1} parent=1 // pred_region
      _
    $region13: #{tpu_custom_call.1} parent=1 // pred_fallthru
      _
    %p15 = scmp.eq.s32.totalorder 0, 0
    // Predicated region
    $region14: #{tpu_custom_call.1} parent=1 // pred_check
      %p16 = pneg %p15
    $region15: #{tpu_custom_call.1} parent=1 // pred_check_branch
      %18 = sbr.rel (%p16) target = $region17
    $region16: #{tpu_custom_call.1} parent=1 // pred_region
      %vm19 = vcmask 130048
      %20 = vst.msk [vmem:[#allocation2] sm:$0xff] %vm19, 0.0
      %21 = vst.msk [vmem:[#allocation2 + $0x8] sm:$0xff] %vm19, 0.0
    $region17: #{tpu_custom_call.1} parent=1 // pred_fallthru
      _
    %v22 = vld [vmem:[%s0] sm:$0xff]
    %v23 = vld [vmem:[%s0 + $0x8] sm:$0xff]
    %v24 = vld [vmem:[%s0 + $0x10] sm:$0xff]
    %v25 = vld [vmem:[%s0 + $0x18] sm:$0xff]
    %v26 = vld [vmem:[%s0 + $0x20] sm:$0xff]
    %v27 = vld [vmem:[%s0 + $0x28] sm:$0xff]
    %v28 = vld [vmem:[%s0 + $0x30] sm:$0xff]
    %v29 = vld [vmem:[%s0 + $0x38] sm:$0xff]
    %v30 = vld [vmem:[%s0 + $0x40] sm:$0xff]
    %v31 = vld [vmem:[%s0 + $0x48] sm:$0xff]
    %v32 = vld [vmem:[%s0 + $0x50] sm:$0xff]
    %v33 = vld [vmem:[%s0 + $0x58] sm:$0xff]
    %v34 = vld [vmem:[%s0 + $0x60] sm:$0xff]
    %v35 = vld [vmem:[%s0 + $0x68] sm:$0xff]
    %v36 = vld [vmem:[%s0 + $0x70] sm:$0xff]
    %v37 = vld [vmem:[%s0 + $0x78] sm:$0xff]
    %v38 = vld [vmem:[%s0 + $0x80] sm:$0xff]
    %v39 = vld [vmem:[%s0 + $0x88] sm:$0xff]
    %v40 = vld [vmem:[%s0 + $0x90] sm:$0xff]
    %v41 = vld [vmem:[%s0 + $0x98] sm:$0xff]
    %v42 = vld [vmem:[%s0 + $0xa0] sm:$0xff]
    %v43 = vld [vmem:[%s0 + $0xa8] sm:$0xff]
    %v44 = vld [vmem:[%s0 + $0xb0] sm:$0xff]
    %v45 = vld [vmem:[%s0 + $0xb8] sm:$0xff]
    %v46 = vld [vmem:[%s0 + $0xc0] sm:$0xff]
    %v47 = vld [vmem:[%s0 + $0xc8] sm:$0xff]
    %v48 = vld [vmem:[%s0 + $0xd0] sm:$0xff]
    %v49 = vld [vmem:[%s0 + $0xd8] sm:$0xff]
    %v50 = vld [vmem:[%s0 + $0xe0] sm:$0xff]
    %v51 = vld [vmem:[%s0 + $0xe8] sm:$0xff]
    %v52 = vld [vmem:[%s0 + $0xf0] sm:$0xff]
    %v53 = vld [vmem:[%s0 + $0xf8] sm:$0xff]
    %v54 = vld [vmem:[%s0 + $0x100] sm:$0xff]
    %v55 = vld [vmem:[%s0 + $0x108] sm:$0xff]
    %v56 = vld [vmem:[%s0 + $0x110] sm:$0xff]
    %v57 = vld [vmem:[%s0 + $0x118] sm:$0xff]
    %v58 = vld [vmem:[%s0 + $0x120] sm:$0xff]
    %v59 = vld [vmem:[%s0 + $0x128] sm:$0xff]
    %v60 = vld [vmem:[%s0 + $0x130] sm:$0xff]
    %v61 = vld [vmem:[%s0 + $0x138] sm:$0xff]
    %v62 = vld [vmem:[%s0 + $0x140] sm:$0xff]
    %v63 = vld [vmem:[%s0 + $0x148] sm:$0xff]
    %v64 = vld [vmem:[%s0 + $0x150] sm:$0xff]
    %v65 = vld [vmem:[%s0 + $0x158] sm:$0xff]
    %v66 = vld [vmem:[%s0 + $0x160] sm:$0xff]
    %v67 = vld [vmem:[%s0 + $0x168] sm:$0xff]
    %v68 = vld [vmem:[%s0 + $0x170] sm:$0xff]
    %v69 = vld [vmem:[%s0 + $0x178] sm:$0xff]
    %v70 = vld [vmem:[%s0 + $0x180] sm:$0xff]
    %v71 = vld [vmem:[%s0 + $0x188] sm:$0xff]
    %v72 = vld [vmem:[%s0 + $0x190] sm:$0xff]
    %v73 = vld [vmem:[%s0 + $0x198] sm:$0xff]
    %v74 = vld [vmem:[%s0 + $0x1a0] sm:$0xff]
    %v75 = vld [vmem:[%s0 + $0x1a8] sm:$0xff]
    %v76 = vld [vmem:[%s0 + $0x1b0] sm:$0xff]
    %v77 = vld [vmem:[%s0 + $0x1b8] sm:$0xff]
    %v78 = vld [vmem:[%s0 + $0x1c0] sm:$0xff]
    %v79 = vld [vmem:[%s0 + $0x1c8] sm:$0xff]
    %v80 = vld [vmem:[%s0 + $0x1d0] sm:$0xff]
    %v81 = vld [vmem:[%s0 + $0x1d8] sm:$0xff]
    %v82 = vld [vmem:[%s0 + $0x1e0] sm:$0xff]
    %v83 = vld [vmem:[%s0 + $0x1e8] sm:$0xff]
    %v84 = vld [vmem:[%s0 + $0x1f0] sm:$0xff]
    %v85 = vld [vmem:[%s0 + $0x1f8] sm:$0xff]
    %v86 = vld [vmem:[%s1] sm:$0x1]
    %v87 = vld [vmem:[%s2] sm:$0x1]
    %152 = vrot.lane.b32.xlu0 %v22, 126
    %v153 = vpop.permute.xlu0 %152
    %154 = vrot.lane.b32.xlu0 %v23, 126
    %v155 = vpop.permute.xlu0 %154
    %156 = vrot.lane.b32.xlu0 %v24, 126
    %v157 = vpop.permute.xlu0 %156
    %158 = vrot.lane.b32.xlu0 %v25, 126
    %v159 = vpop.permute.xlu0 %158
    %160 = vrot.lane.b32.xlu0 %v26, 126
    %v161 = vpop.permute.xlu0 %160
    %162 = vrot.lane.b32.xlu0 %v27, 126
    %v163 = vpop.permute.xlu0 %162
    %164 = vrot.lane.b32.xlu0 %v28, 126
    %v165 = vpop.permute.xlu0 %164
    %166 = vrot.lane.b32.xlu0 %v29, 126
    %v167 = vpop.permute.xlu0 %166
    %168 = vrot.lane.b32.xlu0 %v30, 126
    %v169 = vpop.permute.xlu0 %168
    %170 = vrot.lane.b32.xlu0 %v31, 126
    %v171 = vpop.permute.xlu0 %170
    %172 = vrot.lane.b32.xlu0 %v32, 126
    %v173 = vpop.permute.xlu0 %172
    %174 = vrot.lane.b32.xlu0 %v33, 126
    %v175 = vpop.permute.xlu0 %174
    %176 = vrot.lane.b32.xlu0 %v34, 126
    %v177 = vpop.permute.xlu0 %176
    %178 = vrot.lane.b32.xlu0 %v35, 126
    %v179 = vpop.permute.xlu0 %178
    %180 = vrot.lane.b32.xlu0 %v36, 126
    %v181 = vpop.permute.xlu0 %180
    %182 = vrot.lane.b32.xlu0 %v37, 126
    %v183 = vpop.permute.xlu0 %182
    %184 = vrot.lane.b32.xlu0 %v38, 126
    %v185 = vpop.permute.xlu0 %184
    %186 = vrot.lane.b32.xlu0 %v39, 126
    %v187 = vpop.permute.xlu0 %186
    %188 = vrot.lane.b32.xlu0 %v40, 126
    %v189 = vpop.permute.xlu0 %188
    %190 = vrot.lane.b32.xlu0 %v41, 126
    %v191 = vpop.permute.xlu0 %190
    %192 = vrot.lane.b32.xlu0 %v42, 126
    %v193 = vpop.permute.xlu0 %192
    %194 = vrot.lane.b32.xlu0 %v43, 126
    %v195 = vpop.permute.xlu0 %194
    %196 = vrot.lane.b32.xlu0 %v44, 126
    %v197 = vpop.permute.xlu0 %196
    %198 = vrot.lane.b32.xlu0 %v45, 126
    %v199 = vpop.permute.xlu0 %198
    %200 = vrot.lane.b32.xlu0 %v46, 126
    %v201 = vpop.permute.xlu0 %200
    %202 = vrot.lane.b32.xlu0 %v47, 126
    %v203 = vpop.permute.xlu0 %202
    %204 = vrot.lane.b32.xlu0 %v48, 126
    %v205 = vpop.permute.xlu0 %204
    %206 = vrot.lane.b32.xlu0 %v49, 126
    %v207 = vpop.permute.xlu0 %206
    %208 = vrot.lane.b32.xlu0 %v50, 126
    %v209 = vpop.permute.xlu0 %208
    %210 = vrot.lane.b32.xlu0 %v51, 126
    %v211 = vpop.permute.xlu0 %210
    %212 = vrot.lane.b32.xlu0 %v52, 126
    %v213 = vpop.permute.xlu0 %212
    %214 = vrot.lane.b32.xlu0 %v53, 126
    %v215 = vpop.permute.xlu0 %214
    %216 = vrot.lane.b32.xlu0 %v54, 126
    %v217 = vpop.permute.xlu0 %216
    %218 = vrot.lane.b32.xlu0 %v55, 126
    %v219 = vpop.permute.xlu0 %218
    %220 = vrot.lane.b32.xlu0 %v56, 126
    %v221 = vpop.permute.xlu0 %220
    %222 = vrot.lane.b32.xlu0 %v57, 126
    %v223 = vpop.permute.xlu0 %222
    %224 = vrot.lane.b32.xlu0 %v58, 126
    %v225 = vpop.permute.xlu0 %224
    %226 = vrot.lane.b32.xlu0 %v59, 126
    %v227 = vpop.permute.xlu0 %226
    %228 = vrot.lane.b32.xlu0 %v60, 126
    %v229 = vpop.permute.xlu0 %228
    %230 = vrot.lane.b32.xlu0 %v61, 126
    %v231 = vpop.permute.xlu0 %230
    %232 = vrot.lane.b32.xlu0 %v62, 126
    %v233 = vpop.permute.xlu0 %232
    %234 = vrot.lane.b32.xlu0 %v63, 126
    %v235 = vpop.permute.xlu0 %234
    %236 = vrot.lane.b32.xlu0 %v64, 126
    %v237 = vpop.permute.xlu0 %236
    %238 = vrot.lane.b32.xlu0 %v65, 126
    %v239 = vpop.permute.xlu0 %238
    %240 = vrot.lane.b32.xlu0 %v66, 126
    %v241 = vpop.permute.xlu0 %240
    %242 = vrot.lane.b32.xlu0 %v67, 126
    %v243 = vpop.permute.xlu0 %242
    %244 = vrot.lane.b32.xlu0 %v68, 126
    %v245 = vpop.permute.xlu0 %244
    %246 = vrot.lane.b32.xlu0 %v69, 126
    %v247 = vpop.permute.xlu0 %246
    %248 = vrot.lane.b32.xlu0 %v70, 126
    %v249 = vpop.permute.xlu0 %248
    %250 = vrot.lane.b32.xlu0 %v71, 126
    %v251 = vpop.permute.xlu0 %250
    %252 = vrot.lane.b32.xlu0 %v72, 126
    %v253 = vpop.permute.xlu0 %252
    %254 = vrot.lane.b32.xlu0 %v73, 126
    %v255 = vpop.permute.xlu0 %254
    %256 = vrot.lane.b32.xlu0 %v74, 126
    %v257 = vpop.permute.xlu0 %256
    %258 = vrot.lane.b32.xlu0 %v75, 126
    %v259 = vpop.permute.xlu0 %258
    %260 = vrot.lane.b32.xlu0 %v76, 126
    %v261 = vpop.permute.xlu0 %260
    %262 = vrot.lane.b32.xlu0 %v77, 126
    %v263 = vpop.permute.xlu0 %262
    %264 = vrot.lane.b32.xlu0 %v78, 126
    %v265 = vpop.permute.xlu0 %264
    %266 = vrot.lane.b32.xlu0 %v79, 126
    %v267 = vpop.permute.xlu0 %266
    %268 = vrot.lane.b32.xlu0 %v80, 126
    %v269 = vpop.permute.xlu0 %268
    %270 = vrot.lane.b32.xlu0 %v81, 126
    %v271 = vpop.permute.xlu0 %270
    %272 = vrot.lane.b32.xlu0 %v82, 126
    %v273 = vpop.permute.xlu0 %272
    %274 = vrot.lane.b32.xlu0 %v83, 126
    %v275 = vpop.permute.xlu0 %274
    %276 = vrot.lane.b32.xlu0 %v84, 126
    %v277 = vpop.permute.xlu0 %276
    %278 = vrot.lane.b32.xlu0 %v85, 126
    %v279 = vpop.permute.xlu0 %278
    %v344 = vadd.f32 %v22, %v153
    %v345 = vadd.f32 %v23, %v155
    %v346 = vadd.f32 %v24, %v157
    %v347 = vadd.f32 %v25, %v159
    %v348 = vadd.f32 %v26, %v161
    %v349 = vadd.f32 %v27, %v163
    %v350 = vadd.f32 %v28, %v165
    %v351 = vadd.f32 %v29, %v167
    %v352 = vadd.f32 %v30, %v169
    %v353 = vadd.f32 %v31, %v171
    %v354 = vadd.f32 %v32, %v173
    %v355 = vadd.f32 %v33, %v175
    %v356 = vadd.f32 %v34, %v177
    %v357 = vadd.f32 %v35, %v179
    %v358 = vadd.f32 %v36, %v181
    %v359 = vadd.f32 %v37, %v183
    %v360 = vadd.f32 %v38, %v185
    %v361 = vadd.f32 %v39, %v187
    %v362 = vadd.f32 %v40, %v189
    %v363 = vadd.f32 %v41, %v191
    %v364 = vadd.f32 %v42, %v193
    %v365 = vadd.f32 %v43, %v195
    %v366 = vadd.f32 %v44, %v197
    %v367 = vadd.f32 %v45, %v199
    %v368 = vadd.f32 %v46, %v201
    %v369 = vadd.f32 %v47, %v203
    %v370 = vadd.f32 %v48, %v205
    %v371 = vadd.f32 %v49, %v207
    %v372 = vadd.f32 %v50, %v209
    %v373 = vadd.f32 %v51, %v211
    %v374 = vadd.f32 %v52, %v213
    %v375 = vadd.f32 %v53, %v215
    %v376 = vadd.f32 %v54, %v217
    %v377 = vadd.f32 %v55, %v219
    %v378 = vadd.f32 %v56, %v221
    %v379 = vadd.f32 %v57, %v223
    %v380 = vadd.f32 %v58, %v225
    %v381 = vadd.f32 %v59, %v227
    %v382 = vadd.f32 %v60, %v229
    %v383 = vadd.f32 %v61, %v231
    %v384 = vadd.f32 %v62, %v233
    %v385 = vadd.f32 %v63, %v235
    %v386 = vadd.f32 %v64, %v237
    %v387 = vadd.f32 %v65, %v239
    %v388 = vadd.f32 %v66, %v241
    %v389 = vadd.f32 %v67, %v243
    %v390 = vadd.f32 %v68, %v245
    %v391 = vadd.f32 %v69, %v247
    %v392 = vadd.f32 %v70, %v249
    %v393 = vadd.f32 %v71, %v251
    %v394 = vadd.f32 %v72, %v253
    %v395 = vadd.f32 %v73, %v255
    %v396 = vadd.f32 %v74, %v257
    %v397 = vadd.f32 %v75, %v259
    %v398 = vadd.f32 %v76, %v261
    %v399 = vadd.f32 %v77, %v263
    %v400 = vadd.f32 %v78, %v265
    %v401 = vadd.f32 %v79, %v267
    %v402 = vadd.f32 %v80, %v269
    %v403 = vadd.f32 %v81, %v271
    %v404 = vadd.f32 %v82, %v273
    %v405 = vadd.f32 %v83, %v275
    %v406 = vadd.f32 %v84, %v277
    %v407 = vadd.f32 %v85, %v279
    %v408 = vadd.f32 %v86, 1.0
    %410 = vset.pattern.permute.xlu0 0
    %411 = vperm.xlu0 %410, %v344
    %v412 = vpop.permute.xlu0 %411
    %415 = vset.pattern.permute.xlu0 0
    %416 = vperm.xlu0 %415, %v345
    %v417 = vpop.permute.xlu0 %416
    %420 = vset.pattern.permute.xlu0 0
    %421 = vperm.xlu0 %420, %v346
    %v422 = vpop.permute.xlu0 %421
    %425 = vset.pattern.permute.xlu0 0
    %426 = vperm.xlu0 %425, %v347
    %v427 = vpop.permute.xlu0 %426
    %430 = vset.pattern.permute.xlu0 0
    %431 = vperm.xlu0 %430, %v348
    %v432 = vpop.permute.xlu0 %431
    %435 = vset.pattern.permute.xlu0 0
    %436 = vperm.xlu0 %435, %v349
    %v437 = vpop.permute.xlu0 %436
    %440 = vset.pattern.permute.xlu0 0
    %441 = vperm.xlu0 %440, %v350
    %v442 = vpop.permute.xlu0 %441
    %445 = vset.pattern.permute.xlu0 0
    %446 = vperm.xlu0 %445, %v351
    %v447 = vpop.permute.xlu0 %446
    %450 = vset.pattern.permute.xlu0 0
    %451 = vperm.xlu0 %450, %v352
    %v452 = vpop.permute.xlu0 %451
    %455 = vset.pattern.permute.xlu0 0
    %456 = vperm.xlu0 %455, %v353
    %v457 = vpop.permute.xlu0 %456
    %460 = vset.pattern.permute.xlu0 0
    %461 = vperm.xlu0 %460, %v354
    %v462 = vpop.permute.xlu0 %461
    %465 = vset.pattern.permute.xlu0 0
    %466 = vperm.xlu0 %465, %v355
    %v467 = vpop.permute.xlu0 %466
    %470 = vset.pattern.permute.xlu0 0
    %471 = vperm.xlu0 %470, %v356
    %v472 = vpop.permute.xlu0 %471
    %475 = vset.pattern.permute.xlu0 0
    %476 = vperm.xlu0 %475, %v357
    %v477 = vpop.permute.xlu0 %476
    %480 = vset.pattern.permute.xlu0 0
    %481 = vperm.xlu0 %480, %v358
    %v482 = vpop.permute.xlu0 %481
    %485 = vset.pattern.permute.xlu0 0
    %486 = vperm.xlu0 %485, %v359
    %v487 = vpop.permute.xlu0 %486
    %490 = vset.pattern.permute.xlu0 0
    %491 = vperm.xlu0 %490, %v360
    %v492 = vpop.permute.xlu0 %491
    %495 = vset.pattern.permute.xlu0 0
    %496 = vperm.xlu0 %495, %v361
    %v497 = vpop.permute.xlu0 %496
    %500 = vset.pattern.permute.xlu0 0
    %501 = vperm.xlu0 %500, %v362
    %v502 = vpop.permute.xlu0 %501
    %505 = vset.pattern.permute.xlu0 0
    %506 = vperm.xlu0 %505, %v363
    %v507 = vpop.permute.xlu0 %506
    %510 = vset.pattern.permute.xlu0 0
    %511 = vperm.xlu0 %510, %v364
    %v512 = vpop.permute.xlu0 %511
    %515 = vset.pattern.permute.xlu0 0
    %516 = vperm.xlu0 %515, %v365
    %v517 = vpop.permute.xlu0 %516
    %520 = vset.pattern.permute.xlu0 0
    %521 = vperm.xlu0 %520, %v366
    %v522 = vpop.permute.xlu0 %521
    %525 = vset.pattern.permute.xlu0 0
    %526 = vperm.xlu0 %525, %v367
    %v527 = vpop.permute.xlu0 %526
    %530 = vset.pattern.permute.xlu0 0
    %531 = vperm.xlu0 %530, %v368
    %v532 = vpop.permute.xlu0 %531
    %535 = vset.pattern.permute.xlu0 0
    %536 = vperm.xlu0 %535, %v369
    %v537 = vpop.permute.xlu0 %536
    %540 = vset.pattern.permute.xlu0 0
    %541 = vperm.xlu0 %540, %v370
    %v542 = vpop.permute.xlu0 %541
    %545 = vset.pattern.permute.xlu0 0
    %546 = vperm.xlu0 %545, %v371
    %v547 = vpop.permute.xlu0 %546
    %550 = vset.pattern.permute.xlu0 0
    %551 = vperm.xlu0 %550, %v372
    %v552 = vpop.permute.xlu0 %551
    %555 = vset.pattern.permute.xlu0 0
    %556 = vperm.xlu0 %555, %v373
    %v557 = vpop.permute.xlu0 %556
    %560 = vset.pattern.permute.xlu0 0
    %561 = vperm.xlu0 %560, %v374
    %v562 = vpop.permute.xlu0 %561
    %565 = vset.pattern.permute.xlu0 0
    %566 = vperm.xlu0 %565, %v375
    %v567 = vpop.permute.xlu0 %566
    %570 = vset.pattern.permute.xlu0 0
    %571 = vperm.xlu0 %570, %v376
    %v572 = vpop.permute.xlu0 %571
    %575 = vset.pattern.permute.xlu0 0
    %576 = vperm.xlu0 %575, %v377
    %v577 = vpop.permute.xlu0 %576
    %580 = vset.pattern.permute.xlu0 0
    %581 = vperm.xlu0 %580, %v378
    %v582 = vpop.permute.xlu0 %581
    %585 = vset.pattern.permute.xlu0 0
    %586 = vperm.xlu0 %585, %v379
    %v587 = vpop.permute.xlu0 %586
    %590 = vset.pattern.permute.xlu0 0
    %591 = vperm.xlu0 %590, %v380
    %v592 = vpop.permute.xlu0 %591
    %595 = vset.pattern.permute.xlu0 0
    %596 = vperm.xlu0 %595, %v381
    %v597 = vpop.permute.xlu0 %596
    %600 = vset.pattern.permute.xlu0 0
    %601 = vperm.xlu0 %600, %v382
    %v602 = vpop.permute.xlu0 %601
    %605 = vset.pattern.permute.xlu0 0
    %606 = vperm.xlu0 %605, %v383
    %v607 = vpop.permute.xlu0 %606
    %610 = vset.pattern.permute.xlu0 0
    %611 = vperm.xlu0 %610, %v384
    %v612 = vpop.permute.xlu0 %611
    %615 = vset.pattern.permute.xlu0 0
    %616 = vperm.xlu0 %615, %v385
    %v617 = vpop.permute.xlu0 %616
    %620 = vset.pattern.permute.xlu0 0
    %621 = vperm.xlu0 %620, %v386
    %v622 = vpop.permute.xlu0 %621
    %625 = vset.pattern.permute.xlu0 0
    %626 = vperm.xlu0 %625, %v387
    %v627 = vpop.permute.xlu0 %626
    %630 = vset.pattern.permute.xlu0 0
    %631 = vperm.xlu0 %630, %v388
    %v632 = vpop.permute.xlu0 %631
    %635 = vset.pattern.permute.xlu0 0
    %636 = vperm.xlu0 %635, %v389
    %v637 = vpop.permute.xlu0 %636
    %640 = vset.pattern.permute.xlu0 0
    %641 = vperm.xlu0 %640, %v390
    %v642 = vpop.permute.xlu0 %641
    %645 = vset.pattern.permute.xlu0 0
    %646 = vperm.xlu0 %645, %v391
    %v647 = vpop.permute.xlu0 %646
    %650 = vset.pattern.permute.xlu0 0
    %651 = vperm.xlu0 %650, %v392
    %v652 = vpop.permute.xlu0 %651
    %655 = vset.pattern.permute.xlu0 0
    %656 = vperm.xlu0 %655, %v393
    %v657 = vpop.permute.xlu0 %656
    %660 = vset.pattern.permute.xlu0 0
    %661 = vperm.xlu0 %660, %v394
    %v662 = vpop.permute.xlu0 %661
    %665 = vset.pattern.permute.xlu0 0
    %666 = vperm.xlu0 %665, %v395
    %v667 = vpop.permute.xlu0 %666
    %670 = vset.pattern.permute.xlu0 0
    %671 = vperm.xlu0 %670, %v396
    %v672 = vpop.permute.xlu0 %671
    %675 = vset.pattern.permute.xlu0 0
    %676 = vperm.xlu0 %675, %v397
    %v677 = vpop.permute.xlu0 %676
    %680 = vset.pattern.permute.xlu0 0
    %681 = vperm.xlu0 %680, %v398
    %v682 = vpop.permute.xlu0 %681
    %685 = vset.pattern.permute.xlu0 0
    %686 = vperm.xlu0 %685, %v399
    %v687 = vpop.permute.xlu0 %686
    %690 = vset.pattern.permute.xlu0 0
    %691 = vperm.xlu0 %690, %v400
    %v692 = vpop.permute.xlu0 %691
    %695 = vset.pattern.permute.xlu0 0
    %696 = vperm.xlu0 %695, %v401
    %v697 = vpop.permute.xlu0 %696
    %700 = vset.pattern.permute.xlu0 0
    %701 = vperm.xlu0 %700, %v402
    %v702 = vpop.permute.xlu0 %701
    %705 = vset.pattern.permute.xlu0 0
    %706 = vperm.xlu0 %705, %v403
    %v707 = vpop.permute.xlu0 %706
    %710 = vset.pattern.permute.xlu0 0
    %711 = vperm.xlu0 %710, %v404
    %v712 = vpop.permute.xlu0 %711
    %715 = vset.pattern.permute.xlu0 0
    %716 = vperm.xlu0 %715, %v405
    %v717 = vpop.permute.xlu0 %716
    %720 = vset.pattern.permute.xlu0 0
    %721 = vperm.xlu0 %720, %v406
    %v722 = vpop.permute.xlu0 %721
    %725 = vset.pattern.permute.xlu0 0
    %726 = vperm.xlu0 %725, %v407
    %v727 = vpop.permute.xlu0 %726
    %v730 = vperm.slane %v408, 0
    %v732 = vmin.f32 %v412, %v730
    %v733 = vmin.f32 %v417, %v730
    %v734 = vmin.f32 %v422, %v730
    %v735 = vmin.f32 %v427, %v730
    %v736 = vmin.f32 %v432, %v730
    %v737 = vmin.f32 %v437, %v730
    %v738 = vmin.f32 %v442, %v730
    %v739 = vmin.f32 %v447, %v730
    %v740 = vmin.f32 %v452, %v730
    %v741 = vmin.f32 %v457, %v730
    %v742 = vmin.f32 %v462, %v730
    %v743 = vmin.f32 %v467, %v730
    %v744 = vmin.f32 %v472, %v730
    %v745 = vmin.f32 %v477, %v730
    %v746 = vmin.f32 %v482, %v730
    %v747 = vmin.f32 %v487, %v730
    %v748 = vmin.f32 %v492, %v730
    %v749 = vmin.f32 %v497, %v730
    %v750 = vmin.f32 %v502, %v730
    %v751 = vmin.f32 %v507, %v730
    %v752 = vmin.f32 %v512, %v730
    %v753 = vmin.f32 %v517, %v730
    %v754 = vmin.f32 %v522, %v730
    %v755 = vmin.f32 %v527, %v730
    %v756 = vmin.f32 %v532, %v730
    %v757 = vmin.f32 %v537, %v730
    %v758 = vmin.f32 %v542, %v730
    %v759 = vmin.f32 %v547, %v730
    %v760 = vmin.f32 %v552, %v730
    %v761 = vmin.f32 %v557, %v730
    %v762 = vmin.f32 %v562, %v730
    %v763 = vmin.f32 %v567, %v730
    %v764 = vmin.f32 %v572, %v730
    %v765 = vmin.f32 %v577, %v730
    %v766 = vmin.f32 %v582, %v730
    %v767 = vmin.f32 %v587, %v730
    %v768 = vmin.f32 %v592, %v730
    %v769 = vmin.f32 %v597, %v730
    %v770 = vmin.f32 %v602, %v730
    %v771 = vmin.f32 %v607, %v730
    %v772 = vmin.f32 %v612, %v730
    %v773 = vmin.f32 %v617, %v730
    %v774 = vmin.f32 %v622, %v730
    %v775 = vmin.f32 %v627, %v730
    %v776 = vmin.f32 %v632, %v730
    %v777 = vmin.f32 %v637, %v730
    %v778 = vmin.f32 %v642, %v730
    %v779 = vmin.f32 %v647, %v730
    %v780 = vmin.f32 %v652, %v730
    %v781 = vmin.f32 %v657, %v730
    %v782 = vmin.f32 %v662, %v730
    %v783 = vmin.f32 %v667, %v730
    %v784 = vmin.f32 %v672, %v730
    %v785 = vmin.f32 %v677, %v730
    %v786 = vmin.f32 %v682, %v730
    %v787 = vmin.f32 %v687, %v730
    %v788 = vmin.f32 %v692, %v730
    %v789 = vmin.f32 %v697, %v730
    %v790 = vmin.f32 %v702, %v730
    %v791 = vmin.f32 %v707, %v730
    %v792 = vmin.f32 %v712, %v730
    %v793 = vmin.f32 %v717, %v730
    %v794 = vmin.f32 %v722, %v730
    %v795 = vmin.f32 %v727, %v730
    %796 = vset.pattern.permute.xlu0 0
    %797 = vperm.xlu0 %796, %v22
    %v798 = vpop.permute.xlu0 %797
    %800 = vset.pattern.permute.xlu0 0
    %801 = vperm.xlu0 %800, %v23
    %v802 = vpop.permute.xlu0 %801
    %804 = vset.pattern.permute.xlu0 0
    %805 = vperm.xlu0 %804, %v24
    %v806 = vpop.permute.xlu0 %805
    %808 = vset.pattern.permute.xlu0 0
    %809 = vperm.xlu0 %808, %v25
    %v810 = vpop.permute.xlu0 %809
    %812 = vset.pattern.permute.xlu0 0
    %813 = vperm.xlu0 %812, %v26
    %v814 = vpop.permute.xlu0 %813
    %816 = vset.pattern.permute.xlu0 0
    %817 = vperm.xlu0 %816, %v27
    %v818 = vpop.permute.xlu0 %817
    %820 = vset.pattern.permute.xlu0 0
    %821 = vperm.xlu0 %820, %v28
    %v822 = vpop.permute.xlu0 %821
    %824 = vset.pattern.permute.xlu0 0
    %825 = vperm.xlu0 %824, %v29
    %v826 = vpop.permute.xlu0 %825
    %828 = vset.pattern.permute.xlu0 0
    %829 = vperm.xlu0 %828, %v30
    %v830 = vpop.permute.xlu0 %829
    %832 = vset.pattern.permute.xlu0 0
    %833 = vperm.xlu0 %832, %v31
    %v834 = vpop.permute.xlu0 %833
    %836 = vset.pattern.permute.xlu0 0
    %837 = vperm.xlu0 %836, %v32
    %v838 = vpop.permute.xlu0 %837
    %840 = vset.pattern.permute.xlu0 0
    %841 = vperm.xlu0 %840, %v33
    %v842 = vpop.permute.xlu0 %841
    %844 = vset.pattern.permute.xlu0 0
    %845 = vperm.xlu0 %844, %v34
    %v846 = vpop.permute.xlu0 %845
    %848 = vset.pattern.permute.xlu0 0
    %849 = vperm.xlu0 %848, %v35
    %v850 = vpop.permute.xlu0 %849
    %852 = vset.pattern.permute.xlu0 0
    %853 = vperm.xlu0 %852, %v36
    %v854 = vpop.permute.xlu0 %853
    %856 = vset.pattern.permute.xlu0 0
    %857 = vperm.xlu0 %856, %v37
    %v858 = vpop.permute.xlu0 %857
    %860 = vset.pattern.permute.xlu0 0
    %861 = vperm.xlu0 %860, %v38
    %v862 = vpop.permute.xlu0 %861
    %864 = vset.pattern.permute.xlu0 0
    %865 = vperm.xlu0 %864, %v39
    %v866 = vpop.permute.xlu0 %865
    %868 = vset.pattern.permute.xlu0 0
    %869 = vperm.xlu0 %868, %v40
    %v870 = vpop.permute.xlu0 %869
    %872 = vset.pattern.permute.xlu0 0
    %873 = vperm.xlu0 %872, %v41
    %v874 = vpop.permute.xlu0 %873
    %876 = vset.pattern.permute.xlu0 0
    %877 = vperm.xlu0 %876, %v42
    %v878 = vpop.permute.xlu0 %877
    %880 = vset.pattern.permute.xlu0 0
    %881 = vperm.xlu0 %880, %v43
    %v882 = vpop.permute.xlu0 %881
    %884 = vset.pattern.permute.xlu0 0
    %885 = vperm.xlu0 %884, %v44
    %v886 = vpop.permute.xlu0 %885
    %888 = vset.pattern.permute.xlu0 0
    %889 = vperm.xlu0 %888, %v45
    %v890 = vpop.permute.xlu0 %889
    %892 = vset.pattern.permute.xlu0 0
    %893 = vperm.xlu0 %892, %v46
    %v894 = vpop.permute.xlu0 %893
    %896 = vset.pattern.permute.xlu0 0
    %897 = vperm.xlu0 %896, %v47
    %v898 = vpop.permute.xlu0 %897
    %900 = vset.pattern.permute.xlu0 0
    %901 = vperm.xlu0 %900, %v48
    %v902 = vpop.permute.xlu0 %901
    %904 = vset.pattern.permute.xlu0 0
    %905 = vperm.xlu0 %904, %v49
    %v906 = vpop.permute.xlu0 %905
    %908 = vset.pattern.permute.xlu0 0
    %909 = vperm.xlu0 %908, %v50
    %v910 = vpop.permute.xlu0 %909
    %912 = vset.pattern.permute.xlu0 0
    %913 = vperm.xlu0 %912, %v51
    %v914 = vpop.permute.xlu0 %913
    %916 = vset.pattern.permute.xlu0 0
    %917 = vperm.xlu0 %916, %v52
    %v918 = vpop.permute.xlu0 %917
    %920 = vset.pattern.permute.xlu0 0
    %921 = vperm.xlu0 %920, %v53
    %v922 = vpop.permute.xlu0 %921
    %924 = vset.pattern.permute.xlu0 0
    %925 = vperm.xlu0 %924, %v54
    %v926 = vpop.permute.xlu0 %925
    %928 = vset.pattern.permute.xlu0 0
    %929 = vperm.xlu0 %928, %v55
    %v930 = vpop.permute.xlu0 %929
    %932 = vset.pattern.permute.xlu0 0
    %933 = vperm.xlu0 %932, %v56
    %v934 = vpop.permute.xlu0 %933
    %936 = vset.pattern.permute.xlu0 0
    %937 = vperm.xlu0 %936, %v57
    %v938 = vpop.permute.xlu0 %937
    %940 = vset.pattern.permute.xlu0 0
    %941 = vperm.xlu0 %940, %v58
    %v942 = vpop.permute.xlu0 %941
    %944 = vset.pattern.permute.xlu0 0
    %945 = vperm.xlu0 %944, %v59
    %v946 = vpop.permute.xlu0 %945
    %948 = vset.pattern.permute.xlu0 0
    %949 = vperm.xlu0 %948, %v60
    %v950 = vpop.permute.xlu0 %949
    %952 = vset.pattern.permute.xlu0 0
    %953 = vperm.xlu0 %952, %v61
    %v954 = vpop.permute.xlu0 %953
    %956 = vset.pattern.permute.xlu0 0
    %957 = vperm.xlu0 %956, %v62
    %v958 = vpop.permute.xlu0 %957
    %960 = vset.pattern.permute.xlu0 0
    %961 = vperm.xlu0 %960, %v63
    %v962 = vpop.permute.xlu0 %961
    %964 = vset.pattern.permute.xlu0 0
    %965 = vperm.xlu0 %964, %v64
    %v966 = vpop.permute.xlu0 %965
    %968 = vset.pattern.permute.xlu0 0
    %969 = vperm.xlu0 %968, %v65
    %v970 = vpop.permute.xlu0 %969
    %972 = vset.pattern.permute.xlu0 0
    %973 = vperm.xlu0 %972, %v66
    %v974 = vpop.permute.xlu0 %973
    %976 = vset.pattern.permute.xlu0 0
    %977 = vperm.xlu0 %976, %v67
    %v978 = vpop.permute.xlu0 %977
    %980 = vset.pattern.permute.xlu0 0
    %981 = vperm.xlu0 %980, %v68
    %v982 = vpop.permute.xlu0 %981
    %984 = vset.pattern.permute.xlu0 0
    %985 = vperm.xlu0 %984, %v69
    %v986 = vpop.permute.xlu0 %985
    %988 = vset.pattern.permute.xlu0 0
    %989 = vperm.xlu0 %988, %v70
    %v990 = vpop.permute.xlu0 %989
    %992 = vset.pattern.permute.xlu0 0
    %993 = vperm.xlu0 %992, %v71
    %v994 = vpop.permute.xlu0 %993
    %996 = vset.pattern.permute.xlu0 0
    %997 = vperm.xlu0 %996, %v72
    %v998 = vpop.permute.xlu0 %997
    %1000 = vset.pattern.permute.xlu0 0
    %1001 = vperm.xlu0 %1000, %v73
    %v1002 = vpop.permute.xlu0 %1001
    %1004 = vset.pattern.permute.xlu0 0
    %1005 = vperm.xlu0 %1004, %v74
    %v1006 = vpop.permute.xlu0 %1005
    %1008 = vset.pattern.permute.xlu0 0
    %1009 = vperm.xlu0 %1008, %v75
    %v1010 = vpop.permute.xlu0 %1009
    %1012 = vset.pattern.permute.xlu0 0
    %1013 = vperm.xlu0 %1012, %v76
    %v1014 = vpop.permute.xlu0 %1013
    %1016 = vset.pattern.permute.xlu0 0
    %1017 = vperm.xlu0 %1016, %v77
    %v1018 = vpop.permute.xlu0 %1017
    %1020 = vset.pattern.permute.xlu0 0
    %1021 = vperm.xlu0 %1020, %v78
    %v1022 = vpop.permute.xlu0 %1021
    %1024 = vset.pattern.permute.xlu0 0
    %1025 = vperm.xlu0 %1024, %v79
    %v1026 = vpop.permute.xlu0 %1025
    %1028 = vset.pattern.permute.xlu0 0
    %1029 = vperm.xlu0 %1028, %v80
    %v1030 = vpop.permute.xlu0 %1029
    %1032 = vset.pattern.permute.xlu0 0
    %1033 = vperm.xlu0 %1032, %v81
    %v1034 = vpop.permute.xlu0 %1033
    %1036 = vset.pattern.permute.xlu0 0
    %1037 = vperm.xlu0 %1036, %v82
    %v1038 = vpop.permute.xlu0 %1037
    %1040 = vset.pattern.permute.xlu0 0
    %1041 = vperm.xlu0 %1040, %v83
    %v1042 = vpop.permute.xlu0 %1041
    %1044 = vset.pattern.permute.xlu0 0
    %1045 = vperm.xlu0 %1044, %v84
    %v1046 = vpop.permute.xlu0 %1045
    %1048 = vset.pattern.permute.xlu0 0
    %1049 = vperm.xlu0 %1048, %v85
    %v1050 = vpop.permute.xlu0 %1049
    %v1053 = vperm.slane %v86, 0
    %v1055 = vmax.f32 %v798, %v1053
    %v1056 = vmax.f32 %v802, %v1053
    %v1057 = vmax.f32 %v806, %v1053
    %v1058 = vmax.f32 %v810, %v1053
    %v1059 = vmax.f32 %v814, %v1053
    %v1060 = vmax.f32 %v818, %v1053
    %v1061 = vmax.f32 %v822, %v1053
    %v1062 = vmax.f32 %v826, %v1053
    %v1063 = vmax.f32 %v830, %v1053
    %v1064 = vmax.f32 %v834, %v1053
    %v1065 = vmax.f32 %v838, %v1053
    %v1066 = vmax.f32 %v842, %v1053
    %v1067 = vmax.f32 %v846, %v1053
    %v1068 = vmax.f32 %v850, %v1053
    %v1069 = vmax.f32 %v854, %v1053
    %v1070 = vmax.f32 %v858, %v1053
    %v1071 = vmax.f32 %v862, %v1053
    %v1072 = vmax.f32 %v866, %v1053
    %v1073 = vmax.f32 %v870, %v1053
    %v1074 = vmax.f32 %v874, %v1053
    %v1075 = vmax.f32 %v878, %v1053
    %v1076 = vmax.f32 %v882, %v1053
    %v1077 = vmax.f32 %v886, %v1053
    %v1078 = vmax.f32 %v890, %v1053
    %v1079 = vmax.f32 %v894, %v1053
    %v1080 = vmax.f32 %v898, %v1053
    %v1081 = vmax.f32 %v902, %v1053
    %v1082 = vmax.f32 %v906, %v1053
    %v1083 = vmax.f32 %v910, %v1053
    %v1084 = vmax.f32 %v914, %v1053
    %v1085 = vmax.f32 %v918, %v1053
    %v1086 = vmax.f32 %v922, %v1053
    %v1087 = vmax.f32 %v926, %v1053
    %v1088 = vmax.f32 %v930, %v1053
    %v1089 = vmax.f32 %v934, %v1053
    %v1090 = vmax.f32 %v938, %v1053
    %v1091 = vmax.f32 %v942, %v1053
    %v1092 = vmax.f32 %v946, %v1053
    %v1093 = vmax.f32 %v950, %v1053
    %v1094 = vmax.f32 %v954, %v1053
    %v1095 = vmax.f32 %v958, %v1053
    %v1096 = vmax.f32 %v962, %v1053
    %v1097 = vmax.f32 %v966, %v1053
    %v1098 = vmax.f32 %v970, %v1053
    %v1099 = vmax.f32 %v974, %v1053
    %v1100 = vmax.f32 %v978, %v1053
    %v1101 = vmax.f32 %v982, %v1053
    %v1102 = vmax.f32 %v986, %v1053
    %v1103 = vmax.f32 %v990, %v1053
    %v1104 = vmax.f32 %v994, %v1053
    %v1105 = vmax.f32 %v998, %v1053
    %v1106 = vmax.f32 %v1002, %v1053
    %v1107 = vmax.f32 %v1006, %v1053
    %v1108 = vmax.f32 %v1010, %v1053
    %v1109 = vmax.f32 %v1014, %v1053
    %v1110 = vmax.f32 %v1018, %v1053
    %v1111 = vmax.f32 %v1022, %v1053
    %v1112 = vmax.f32 %v1026, %v1053
    %v1113 = vmax.f32 %v1030, %v1053
    %v1114 = vmax.f32 %v1034, %v1053
    %v1115 = vmax.f32 %v1038, %v1053
    %v1116 = vmax.f32 %v1042, %v1053
    %v1117 = vmax.f32 %v1046, %v1053
    %v1118 = vmax.f32 %v1050, %v1053
    %v1119 = vsub.f32 %v732, %v1055
    %v1120 = vsub.f32 %v733, %v1056
    %v1121 = vsub.f32 %v734, %v1057
    %v1122 = vsub.f32 %v735, %v1058
    %v1123 = vsub.f32 %v736, %v1059
    %v1124 = vsub.f32 %v737, %v1060
    %v1125 = vsub.f32 %v738, %v1061
    %v1126 = vsub.f32 %v739, %v1062
    %v1127 = vsub.f32 %v740, %v1063
    %v1128 = vsub.f32 %v741, %v1064
    %v1129 = vsub.f32 %v742, %v1065
    %v1130 = vsub.f32 %v743, %v1066
    %v1131 = vsub.f32 %v744, %v1067
    %v1132 = vsub.f32 %v745, %v1068
    %v1133 = vsub.f32 %v746, %v1069
    %v1134 = vsub.f32 %v747, %v1070
    %v1135 = vsub.f32 %v748, %v1071
    %v1136 = vsub.f32 %v749, %v1072
    %v1137 = vsub.f32 %v750, %v1073
    %v1138 = vsub.f32 %v751, %v1074
    %v1139 = vsub.f32 %v752, %v1075
    %v1140 = vsub.f32 %v753, %v1076
    %v1141 = vsub.f32 %v754, %v1077
    %v1142 = vsub.f32 %v755, %v1078
    %v1143 = vsub.f32 %v756, %v1079
    %v1144 = vsub.f32 %v757, %v1080
    %v1145 = vsub.f32 %v758, %v1081
    %v1146 = vsub.f32 %v759, %v1082
    %v1147 = vsub.f32 %v760, %v1083
    %v1148 = vsub.f32 %v761, %v1084
    %v1149 = vsub.f32 %v762, %v1085
    %v1150 = vsub.f32 %v763, %v1086
    %v1151 = vsub.f32 %v764, %v1087
    %v1152 = vsub.f32 %v765, %v1088
    %v1153 = vsub.f32 %v766, %v1089
    %v1154 = vsub.f32 %v767, %v1090
    %v1155 = vsub.f32 %v768, %v1091
    %v1156 = vsub.f32 %v769, %v1092
    %v1157 = vsub.f32 %v770, %v1093
    %v1158 = vsub.f32 %v771, %v1094
    %v1159 = vsub.f32 %v772, %v1095
    %v1160 = vsub.f32 %v773, %v1096
    %v1161 = vsub.f32 %v774, %v1097
    %v1162 = vsub.f32 %v775, %v1098
    %v1163 = vsub.f32 %v776, %v1099
    %v1164 = vsub.f32 %v777, %v1100
    %v1165 = vsub.f32 %v778, %v1101
    %v1166 = vsub.f32 %v779, %v1102
    %v1167 = vsub.f32 %v780, %v1103
    %v1168 = vsub.f32 %v781, %v1104
    %v1169 = vsub.f32 %v782, %v1105
    %v1170 = vsub.f32 %v783, %v1106
    %v1171 = vsub.f32 %v784, %v1107
    %v1172 = vsub.f32 %v785, %v1108
    %v1173 = vsub.f32 %v786, %v1109
    %v1174 = vsub.f32 %v787, %v1110
    %v1175 = vsub.f32 %v788, %v1111
    %v1176 = vsub.f32 %v789, %v1112
    %v1177 = vsub.f32 %v790, %v1113
    %v1178 = vsub.f32 %v791, %v1114
    %v1179 = vsub.f32 %v792, %v1115
    %v1180 = vsub.f32 %v793, %v1116
    %v1181 = vsub.f32 %v794, %v1117
    %v1182 = vsub.f32 %v795, %v1118
    %v1183 = vmax.f32 %v1119, 0.0
    %v1184 = vmax.f32 %v1120, 0.0
    %v1185 = vmax.f32 %v1121, 0.0
    %v1186 = vmax.f32 %v1122, 0.0
    %v1187 = vmax.f32 %v1123, 0.0
    %v1188 = vmax.f32 %v1124, 0.0
    %v1189 = vmax.f32 %v1125, 0.0
    %v1190 = vmax.f32 %v1126, 0.0
    %v1191 = vmax.f32 %v1127, 0.0
    %v1192 = vmax.f32 %v1128, 0.0
    %v1193 = vmax.f32 %v1129, 0.0
    %v1194 = vmax.f32 %v1130, 0.0
    %v1195 = vmax.f32 %v1131, 0.0
    %v1196 = vmax.f32 %v1132, 0.0
    %v1197 = vmax.f32 %v1133, 0.0
    %v1198 = vmax.f32 %v1134, 0.0
    %v1199 = vmax.f32 %v1135, 0.0
    %v1200 = vmax.f32 %v1136, 0.0
    %v1201 = vmax.f32 %v1137, 0.0
    %v1202 = vmax.f32 %v1138, 0.0
    %v1203 = vmax.f32 %v1139, 0.0
    %v1204 = vmax.f32 %v1140, 0.0
    %v1205 = vmax.f32 %v1141, 0.0
    %v1206 = vmax.f32 %v1142, 0.0
    %v1207 = vmax.f32 %v1143, 0.0
    %v1208 = vmax.f32 %v1144, 0.0
    %v1209 = vmax.f32 %v1145, 0.0
    %v1210 = vmax.f32 %v1146, 0.0
    %v1211 = vmax.f32 %v1147, 0.0
    %v1212 = vmax.f32 %v1148, 0.0
    %v1213 = vmax.f32 %v1149, 0.0
    %v1214 = vmax.f32 %v1150, 0.0
    %v1215 = vmax.f32 %v1151, 0.0
    %v1216 = vmax.f32 %v1152, 0.0
    %v1217 = vmax.f32 %v1153, 0.0
    %v1218 = vmax.f32 %v1154, 0.0
    %v1219 = vmax.f32 %v1155, 0.0
    %v1220 = vmax.f32 %v1156, 0.0
    %v1221 = vmax.f32 %v1157, 0.0
    %v1222 = vmax.f32 %v1158, 0.0
    %v1223 = vmax.f32 %v1159, 0.0
    %v1224 = vmax.f32 %v1160, 0.0
    %v1225 = vmax.f32 %v1161, 0.0
    %v1226 = vmax.f32 %v1162, 0.0
    %v1227 = vmax.f32 %v1163, 0.0
    %v1228 = vmax.f32 %v1164, 0.0
    %v1229 = vmax.f32 %v1165, 0.0
    %v1230 = vmax.f32 %v1166, 0.0
    %v1231 = vmax.f32 %v1167, 0.0
    %v1232 = vmax.f32 %v1168, 0.0
    %v1233 = vmax.f32 %v1169, 0.0
    %v1234 = vmax.f32 %v1170, 0.0
    %v1235 = vmax.f32 %v1171, 0.0
    %v1236 = vmax.f32 %v1172, 0.0
    %v1237 = vmax.f32 %v1173, 0.0
    %v1238 = vmax.f32 %v1174, 0.0
    %v1239 = vmax.f32 %v1175, 0.0
    %v1240 = vmax.f32 %v1176, 0.0
    %v1241 = vmax.f32 %v1177, 0.0
    %v1242 = vmax.f32 %v1178, 0.0
    %v1243 = vmax.f32 %v1179, 0.0
    %v1244 = vmax.f32 %v1180, 0.0
    %v1245 = vmax.f32 %v1181, 0.0
    %v1246 = vmax.f32 %v1182, 0.0
    %v1247 = vadd.f32 %v87, 1.0
    %1248 = vset.pattern.permute.xlu0 1
    %1249 = vperm.xlu0 %1248, %v344
    %v1250 = vpop.permute.xlu0 %1249
    %1252 = vset.pattern.permute.xlu0 1
    %1253 = vperm.xlu0 %1252, %v345
    %v1254 = vpop.permute.xlu0 %1253
    %1256 = vset.pattern.permute.xlu0 1
    %1257 = vperm.xlu0 %1256, %v346
    %v1258 = vpop.permute.xlu0 %1257
    %1260 = vset.pattern.permute.xlu0 1
    %1261 = vperm.xlu0 %1260, %v347
    %v1262 = vpop.permute.xlu0 %1261
    %1264 = vset.pattern.permute.xlu0 1
    %1265 = vperm.xlu0 %1264, %v348
    %v1266 = vpop.permute.xlu0 %1265
    %1268 = vset.pattern.permute.xlu0 1
    %1269 = vperm.xlu0 %1268, %v349
    %v1270 = vpop.permute.xlu0 %1269
    %1272 = vset.pattern.permute.xlu0 1
    %1273 = vperm.xlu0 %1272, %v350
    %v1274 = vpop.permute.xlu0 %1273
    %1276 = vset.pattern.permute.xlu0 1
    %1277 = vperm.xlu0 %1276, %v351
    %v1278 = vpop.permute.xlu0 %1277
    %1280 = vset.pattern.permute.xlu0 1
    %1281 = vperm.xlu0 %1280, %v352
    %v1282 = vpop.permute.xlu0 %1281
    %1284 = vset.pattern.permute.xlu0 1
    %1285 = vperm.xlu0 %1284, %v353
    %v1286 = vpop.permute.xlu0 %1285
    %1288 = vset.pattern.permute.xlu0 1
    %1289 = vperm.xlu0 %1288, %v354
    %v1290 = vpop.permute.xlu0 %1289
    %1292 = vset.pattern.permute.xlu0 1
    %1293 = vperm.xlu0 %1292, %v355
    %v1294 = vpop.permute.xlu0 %1293
    %1296 = vset.pattern.permute.xlu0 1
    %1297 = vperm.xlu0 %1296, %v356
    %v1298 = vpop.permute.xlu0 %1297
    %1300 = vset.pattern.permute.xlu0 1
    %1301 = vperm.xlu0 %1300, %v357
    %v1302 = vpop.permute.xlu0 %1301
    %1304 = vset.pattern.permute.xlu0 1
    %1305 = vperm.xlu0 %1304, %v358
    %v1306 = vpop.permute.xlu0 %1305
    %1308 = vset.pattern.permute.xlu0 1
    %1309 = vperm.xlu0 %1308, %v359
    %v1310 = vpop.permute.xlu0 %1309
    %1312 = vset.pattern.permute.xlu0 1
    %1313 = vperm.xlu0 %1312, %v360
    %v1314 = vpop.permute.xlu0 %1313
    %1316 = vset.pattern.permute.xlu0 1
    %1317 = vperm.xlu0 %1316, %v361
    %v1318 = vpop.permute.xlu0 %1317
    %1320 = vset.pattern.permute.xlu0 1
    %1321 = vperm.xlu0 %1320, %v362
    %v1322 = vpop.permute.xlu0 %1321
    %1324 = vset.pattern.permute.xlu0 1
    %1325 = vperm.xlu0 %1324, %v363
    %v1326 = vpop.permute.xlu0 %1325
    %1328 = vset.pattern.permute.xlu0 1
    %1329 = vperm.xlu0 %1328, %v364
    %v1330 = vpop.permute.xlu0 %1329
    %1332 = vset.pattern.permute.xlu0 1
    %1333 = vperm.xlu0 %1332, %v365
    %v1334 = vpop.permute.xlu0 %1333
    %1336 = vset.pattern.permute.xlu0 1
    %1337 = vperm.xlu0 %1336, %v366
    %v1338 = vpop.permute.xlu0 %1337
    %1340 = vset.pattern.permute.xlu0 1
    %1341 = vperm.xlu0 %1340, %v367
    %v1342 = vpop.permute.xlu0 %1341
    %1344 = vset.pattern.permute.xlu0 1
    %1345 = vperm.xlu0 %1344, %v368
    %v1346 = vpop.permute.xlu0 %1345
    %1348 = vset.pattern.permute.xlu0 1
    %1349 = vperm.xlu0 %1348, %v369
    %v1350 = vpop.permute.xlu0 %1349
    %1352 = vset.pattern.permute.xlu0 1
    %1353 = vperm.xlu0 %1352, %v370
    %v1354 = vpop.permute.xlu0 %1353
    %1356 = vset.pattern.permute.xlu0 1
    %1357 = vperm.xlu0 %1356, %v371
    %v1358 = vpop.permute.xlu0 %1357
    %1360 = vset.pattern.permute.xlu0 1
    %1361 = vperm.xlu0 %1360, %v372
    %v1362 = vpop.permute.xlu0 %1361
    %1364 = vset.pattern.permute.xlu0 1
    %1365 = vperm.xlu0 %1364, %v373
    %v1366 = vpop.permute.xlu0 %1365
    %1368 = vset.pattern.permute.xlu0 1
    %1369 = vperm.xlu0 %1368, %v374
    %v1370 = vpop.permute.xlu0 %1369
    %1372 = vset.pattern.permute.xlu0 1
    %1373 = vperm.xlu0 %1372, %v375
    %v1374 = vpop.permute.xlu0 %1373
    %1376 = vset.pattern.permute.xlu0 1
    %1377 = vperm.xlu0 %1376, %v376
    %v1378 = vpop.permute.xlu0 %1377
    %1380 = vset.pattern.permute.xlu0 1
    %1381 = vperm.xlu0 %1380, %v377
    %v1382 = vpop.permute.xlu0 %1381
    %1384 = vset.pattern.permute.xlu0 1
    %1385 = vperm.xlu0 %1384, %v378
    %v1386 = vpop.permute.xlu0 %1385
    %1388 = vset.pattern.permute.xlu0 1
    %1389 = vperm.xlu0 %1388, %v379
    %v1390 = vpop.permute.xlu0 %1389
    %1392 = vset.pattern.permute.xlu0 1
    %1393 = vperm.xlu0 %1392, %v380
    %v1394 = vpop.permute.xlu0 %1393
    %1396 = vset.pattern.permute.xlu0 1
    %1397 = vperm.xlu0 %1396, %v381
    %v1398 = vpop.permute.xlu0 %1397
    %1400 = vset.pattern.permute.xlu0 1
    %1401 = vperm.xlu0 %1400, %v382
    %v1402 = vpop.permute.xlu0 %1401
    %1404 = vset.pattern.permute.xlu0 1
    %1405 = vperm.xlu0 %1404, %v383
    %v1406 = vpop.permute.xlu0 %1405
    %1408 = vset.pattern.permute.xlu0 1
    %1409 = vperm.xlu0 %1408, %v384
    %v1410 = vpop.permute.xlu0 %1409
    %1412 = vset.pattern.permute.xlu0 1
    %1413 = vperm.xlu0 %1412, %v385
    %v1414 = vpop.permute.xlu0 %1413
    %1416 = vset.pattern.permute.xlu0 1
    %1417 = vperm.xlu0 %1416, %v386
    %v1418 = vpop.permute.xlu0 %1417
    %1420 = vset.pattern.permute.xlu0 1
    %1421 = vperm.xlu0 %1420, %v387
    %v1422 = vpop.permute.xlu0 %1421
    %1424 = vset.pattern.permute.xlu0 1
    %1425 = vperm.xlu0 %1424, %v388
    %v1426 = vpop.permute.xlu0 %1425
    %1428 = vset.pattern.permute.xlu0 1
    %1429 = vperm.xlu0 %1428, %v389
    %v1430 = vpop.permute.xlu0 %1429
    %1432 = vset.pattern.permute.xlu0 1
    %1433 = vperm.xlu0 %1432, %v390
    %v1434 = vpop.permute.xlu0 %1433
    %1436 = vset.pattern.permute.xlu0 1
    %1437 = vperm.xlu0 %1436, %v391
    %v1438 = vpop.permute.xlu0 %1437
    %1440 = vset.pattern.permute.xlu0 1
    %1441 = vperm.xlu0 %1440, %v392
    %v1442 = vpop.permute.xlu0 %1441
    %1444 = vset.pattern.permute.xlu0 1
    %1445 = vperm.xlu0 %1444, %v393
    %v1446 = vpop.permute.xlu0 %1445
    %1448 = vset.pattern.permute.xlu0 1
    %1449 = vperm.xlu0 %1448, %v394
    %v1450 = vpop.permute.xlu0 %1449
    %1452 = vset.pattern.permute.xlu0 1
    %1453 = vperm.xlu0 %1452, %v395
    %v1454 = vpop.permute.xlu0 %1453
    %1456 = vset.pattern.permute.xlu0 1
    %1457 = vperm.xlu0 %1456, %v396
    %v1458 = vpop.permute.xlu0 %1457
    %1460 = vset.pattern.permute.xlu0 1
    %1461 = vperm.xlu0 %1460, %v397
    %v1462 = vpop.permute.xlu0 %1461
    %1464 = vset.pattern.permute.xlu0 1
    %1465 = vperm.xlu0 %1464, %v398
    %v1466 = vpop.permute.xlu0 %1465
    %1468 = vset.pattern.permute.xlu0 1
    %1469 = vperm.xlu0 %1468, %v399
    %v1470 = vpop.permute.xlu0 %1469
    %1472 = vset.pattern.permute.xlu0 1
    %1473 = vperm.xlu0 %1472, %v400
    %v1474 = vpop.permute.xlu0 %1473
    %1476 = vset.pattern.permute.xlu0 1
    %1477 = vperm.xlu0 %1476, %v401
    %v1478 = vpop.permute.xlu0 %1477
    %1480 = vset.pattern.permute.xlu0 1
    %1481 = vperm.xlu0 %1480, %v402
    %v1482 = vpop.permute.xlu0 %1481
    %1484 = vset.pattern.permute.xlu0 1
    %1485 = vperm.xlu0 %1484, %v403
    %v1486 = vpop.permute.xlu0 %1485
    %1488 = vset.pattern.permute.xlu0 1
    %1489 = vperm.xlu0 %1488, %v404
    %v1490 = vpop.permute.xlu0 %1489
    %1492 = vset.pattern.permute.xlu0 1
    %1493 = vperm.xlu0 %1492, %v405
    %v1494 = vpop.permute.xlu0 %1493
    %1496 = vset.pattern.permute.xlu0 1
    %1497 = vperm.xlu0 %1496, %v406
    %v1498 = vpop.permute.xlu0 %1497
    %1500 = vset.pattern.permute.xlu0 1
    %1501 = vperm.xlu0 %1500, %v407
    %v1502 = vpop.permute.xlu0 %1501
    %v1505 = vperm.slane %v1247, 0
    %v1507 = vmin.f32 %v1250, %v1505
    %v1508 = vmin.f32 %v1254, %v1505
    %v1509 = vmin.f32 %v1258, %v1505
    %v1510 = vmin.f32 %v1262, %v1505
    %v1511 = vmin.f32 %v1266, %v1505
    %v1512 = vmin.f32 %v1270, %v1505
    %v1513 = vmin.f32 %v1274, %v1505
    %v1514 = vmin.f32 %v1278, %v1505
    %v1515 = vmin.f32 %v1282, %v1505
    %v1516 = vmin.f32 %v1286, %v1505
    %v1517 = vmin.f32 %v1290, %v1505
    %v1518 = vmin.f32 %v1294, %v1505
    %v1519 = vmin.f32 %v1298, %v1505
    %v1520 = vmin.f32 %v1302, %v1505
    %v1521 = vmin.f32 %v1306, %v1505
    %v1522 = vmin.f32 %v1310, %v1505
    %v1523 = vmin.f32 %v1314, %v1505
    %v1524 = vmin.f32 %v1318, %v1505
    %v1525 = vmin.f32 %v1322, %v1505
    %v1526 = vmin.f32 %v1326, %v1505
    %v1527 = vmin.f32 %v1330, %v1505
    %v1528 = vmin.f32 %v1334, %v1505
    %v1529 = vmin.f32 %v1338, %v1505
    %v1530 = vmin.f32 %v1342, %v1505
    %v1531 = vmin.f32 %v1346, %v1505
    %v1532 = vmin.f32 %v1350, %v1505
    %v1533 = vmin.f32 %v1354, %v1505
    %v1534 = vmin.f32 %v1358, %v1505
    %v1535 = vmin.f32 %v1362, %v1505
    %v1536 = vmin.f32 %v1366, %v1505
    %v1537 = vmin.f32 %v1370, %v1505
    %v1538 = vmin.f32 %v1374, %v1505
    %v1539 = vmin.f32 %v1378, %v1505
    %v1540 = vmin.f32 %v1382, %v1505
    %v1541 = vmin.f32 %v1386, %v1505
    %v1542 = vmin.f32 %v1390, %v1505
    %v1543 = vmin.f32 %v1394, %v1505
    %v1544 = vmin.f32 %v1398, %v1505
    %v1545 = vmin.f32 %v1402, %v1505
    %v1546 = vmin.f32 %v1406, %v1505
    %v1547 = vmin.f32 %v1410, %v1505
    %v1548 = vmin.f32 %v1414, %v1505
    %v1549 = vmin.f32 %v1418, %v1505
    %v1550 = vmin.f32 %v1422, %v1505
    %v1551 = vmin.f32 %v1426, %v1505
    %v1552 = vmin.f32 %v1430, %v1505
    %v1553 = vmin.f32 %v1434, %v1505
    %v1554 = vmin.f32 %v1438, %v1505
    %v1555 = vmin.f32 %v1442, %v1505
    %v1556 = vmin.f32 %v1446, %v1505
    %v1557 = vmin.f32 %v1450, %v1505
    %v1558 = vmin.f32 %v1454, %v1505
    %v1559 = vmin.f32 %v1458, %v1505
    %v1560 = vmin.f32 %v1462, %v1505
    %v1561 = vmin.f32 %v1466, %v1505
    %v1562 = vmin.f32 %v1470, %v1505
    %v1563 = vmin.f32 %v1474, %v1505
    %v1564 = vmin.f32 %v1478, %v1505
    %v1565 = vmin.f32 %v1482, %v1505
    %v1566 = vmin.f32 %v1486, %v1505
    %v1567 = vmin.f32 %v1490, %v1505
    %v1568 = vmin.f32 %v1494, %v1505
    %v1569 = vmin.f32 %v1498, %v1505
    %v1570 = vmin.f32 %v1502, %v1505
    %1571 = vset.pattern.permute.xlu0 1
    %1572 = vperm.xlu0 %1571, %v22
    %v1573 = vpop.permute.xlu0 %1572
    %1575 = vset.pattern.permute.xlu0 1
    %1576 = vperm.xlu0 %1575, %v23
    %v1577 = vpop.permute.xlu0 %1576
    %1579 = vset.pattern.permute.xlu0 1
    %1580 = vperm.xlu0 %1579, %v24
    %v1581 = vpop.permute.xlu0 %1580
    %1583 = vset.pattern.permute.xlu0 1
    %1584 = vperm.xlu0 %1583, %v25
    %v1585 = vpop.permute.xlu0 %1584
    %1587 = vset.pattern.permute.xlu0 1
    %1588 = vperm.xlu0 %1587, %v26
    %v1589 = vpop.permute.xlu0 %1588
    %1591 = vset.pattern.permute.xlu0 1
    %1592 = vperm.xlu0 %1591, %v27
    %v1593 = vpop.permute.xlu0 %1592
    %1595 = vset.pattern.permute.xlu0 1
    %1596 = vperm.xlu0 %1595, %v28
    %v1597 = vpop.permute.xlu0 %1596
    %1599 = vset.pattern.permute.xlu0 1
    %1600 = vperm.xlu0 %1599, %v29
    %v1601 = vpop.permute.xlu0 %1600
    %1603 = vset.pattern.permute.xlu0 1
    %1604 = vperm.xlu0 %1603, %v30
    %v1605 = vpop.permute.xlu0 %1604
    %1607 = vset.pattern.permute.xlu0 1
    %1608 = vperm.xlu0 %1607, %v31
    %v1609 = vpop.permute.xlu0 %1608
    %1611 = vset.pattern.permute.xlu0 1
    %1612 = vperm.xlu0 %1611, %v32
    %v1613 = vpop.permute.xlu0 %1612
    %1615 = vset.pattern.permute.xlu0 1
    %1616 = vperm.xlu0 %1615, %v33
    %v1617 = vpop.permute.xlu0 %1616
    %1619 = vset.pattern.permute.xlu0 1
    %1620 = vperm.xlu0 %1619, %v34
    %v1621 = vpop.permute.xlu0 %1620
    %1623 = vset.pattern.permute.xlu0 1
    %1624 = vperm.xlu0 %1623, %v35
    %v1625 = vpop.permute.xlu0 %1624
    %1627 = vset.pattern.permute.xlu0 1
    %1628 = vperm.xlu0 %1627, %v36
    %v1629 = vpop.permute.xlu0 %1628
    %1631 = vset.pattern.permute.xlu0 1
    %1632 = vperm.xlu0 %1631, %v37
    %v1633 = vpop.permute.xlu0 %1632
    %1635 = vset.pattern.permute.xlu0 1
    %1636 = vperm.xlu0 %1635, %v38
    %v1637 = vpop.permute.xlu0 %1636
    %1639 = vset.pattern.permute.xlu0 1
    %1640 = vperm.xlu0 %1639, %v39
    %v1641 = vpop.permute.xlu0 %1640
    %1643 = vset.pattern.permute.xlu0 1
    %1644 = vperm.xlu0 %1643, %v40
    %v1645 = vpop.permute.xlu0 %1644
    %1647 = vset.pattern.permute.xlu0 1
    %1648 = vperm.xlu0 %1647, %v41
    %v1649 = vpop.permute.xlu0 %1648
    %1651 = vset.pattern.permute.xlu0 1
    %1652 = vperm.xlu0 %1651, %v42
    %v1653 = vpop.permute.xlu0 %1652
    %1655 = vset.pattern.permute.xlu0 1
    %1656 = vperm.xlu0 %1655, %v43
    %v1657 = vpop.permute.xlu0 %1656
    %1659 = vset.pattern.permute.xlu0 1
    %1660 = vperm.xlu0 %1659, %v44
    %v1661 = vpop.permute.xlu0 %1660
    %1663 = vset.pattern.permute.xlu0 1
    %1664 = vperm.xlu0 %1663, %v45
    %v1665 = vpop.permute.xlu0 %1664
    %1667 = vset.pattern.permute.xlu0 1
    %1668 = vperm.xlu0 %1667, %v46
    %v1669 = vpop.permute.xlu0 %1668
    %1671 = vset.pattern.permute.xlu0 1
    %1672 = vperm.xlu0 %1671, %v47
    %v1673 = vpop.permute.xlu0 %1672
    %1675 = vset.pattern.permute.xlu0 1
    %1676 = vperm.xlu0 %1675, %v48
    %v1677 = vpop.permute.xlu0 %1676
    %1679 = vset.pattern.permute.xlu0 1
    %1680 = vperm.xlu0 %1679, %v49
    %v1681 = vpop.permute.xlu0 %1680
    %1683 = vset.pattern.permute.xlu0 1
    %1684 = vperm.xlu0 %1683, %v50
    %v1685 = vpop.permute.xlu0 %1684
    %1687 = vset.pattern.permute.xlu0 1
    %1688 = vperm.xlu0 %1687, %v51
    %v1689 = vpop.permute.xlu0 %1688
    %1691 = vset.pattern.permute.xlu0 1
    %1692 = vperm.xlu0 %1691, %v52
    %v1693 = vpop.permute.xlu0 %1692
    %1695 = vset.pattern.permute.xlu0 1
    %1696 = vperm.xlu0 %1695, %v53
    %v1697 = vpop.permute.xlu0 %1696
    %1699 = vset.pattern.permute.xlu0 1
    %1700 = vperm.xlu0 %1699, %v54
    %v1701 = vpop.permute.xlu0 %1700
    %1703 = vset.pattern.permute.xlu0 1
    %1704 = vperm.xlu0 %1703, %v55
    %v1705 = vpop.permute.xlu0 %1704
    %1707 = vset.pattern.permute.xlu0 1
    %1708 = vperm.xlu0 %1707, %v56
    %v1709 = vpop.permute.xlu0 %1708
    %1711 = vset.pattern.permute.xlu0 1
    %1712 = vperm.xlu0 %1711, %v57
    %v1713 = vpop.permute.xlu0 %1712
    %1715 = vset.pattern.permute.xlu0 1
    %1716 = vperm.xlu0 %1715, %v58
    %v1717 = vpop.permute.xlu0 %1716
    %1719 = vset.pattern.permute.xlu0 1
    %1720 = vperm.xlu0 %1719, %v59
    %v1721 = vpop.permute.xlu0 %1720
    %1723 = vset.pattern.permute.xlu0 1
    %1724 = vperm.xlu0 %1723, %v60
    %v1725 = vpop.permute.xlu0 %1724
    %1727 = vset.pattern.permute.xlu0 1
    %1728 = vperm.xlu0 %1727, %v61
    %v1729 = vpop.permute.xlu0 %1728
    %1731 = vset.pattern.permute.xlu0 1
    %1732 = vperm.xlu0 %1731, %v62
    %v1733 = vpop.permute.xlu0 %1732
    %1735 = vset.pattern.permute.xlu0 1
    %1736 = vperm.xlu0 %1735, %v63
    %v1737 = vpop.permute.xlu0 %1736
    %1739 = vset.pattern.permute.xlu0 1
    %1740 = vperm.xlu0 %1739, %v64
    %v1741 = vpop.permute.xlu0 %1740
    %1743 = vset.pattern.permute.xlu0 1
    %1744 = vperm.xlu0 %1743, %v65
    %v1745 = vpop.permute.xlu0 %1744
    %1747 = vset.pattern.permute.xlu0 1
    %1748 = vperm.xlu0 %1747, %v66
    %v1749 = vpop.permute.xlu0 %1748
    %1751 = vset.pattern.permute.xlu0 1
    %1752 = vperm.xlu0 %1751, %v67
    %v1753 = vpop.permute.xlu0 %1752
    %1755 = vset.pattern.permute.xlu0 1
    %1756 = vperm.xlu0 %1755, %v68
    %v1757 = vpop.permute.xlu0 %1756
    %1759 = vset.pattern.permute.xlu0 1
    %1760 = vperm.xlu0 %1759, %v69
    %v1761 = vpop.permute.xlu0 %1760
    %1763 = vset.pattern.permute.xlu0 1
    %1764 = vperm.xlu0 %1763, %v70
    %v1765 = vpop.permute.xlu0 %1764
    %1767 = vset.pattern.permute.xlu0 1
    %1768 = vperm.xlu0 %1767, %v71
    %v1769 = vpop.permute.xlu0 %1768
    %1771 = vset.pattern.permute.xlu0 1
    %1772 = vperm.xlu0 %1771, %v72
    %v1773 = vpop.permute.xlu0 %1772
    %1775 = vset.pattern.permute.xlu0 1
    %1776 = vperm.xlu0 %1775, %v73
    %v1777 = vpop.permute.xlu0 %1776
    %1779 = vset.pattern.permute.xlu0 1
    %1780 = vperm.xlu0 %1779, %v74
    %v1781 = vpop.permute.xlu0 %1780
    %1783 = vset.pattern.permute.xlu0 1
    %1784 = vperm.xlu0 %1783, %v75
    %v1785 = vpop.permute.xlu0 %1784
    %1787 = vset.pattern.permute.xlu0 1
    %1788 = vperm.xlu0 %1787, %v76
    %v1789 = vpop.permute.xlu0 %1788
    %1791 = vset.pattern.permute.xlu0 1
    %1792 = vperm.xlu0 %1791, %v77
    %v1793 = vpop.permute.xlu0 %1792
    %1795 = vset.pattern.permute.xlu0 1
    %1796 = vperm.xlu0 %1795, %v78
    %v1797 = vpop.permute.xlu0 %1796
    %1799 = vset.pattern.permute.xlu0 1
    %1800 = vperm.xlu0 %1799, %v79
    %v1801 = vpop.permute.xlu0 %1800
    %1803 = vset.pattern.permute.xlu0 1
    %1804 = vperm.xlu0 %1803, %v80
    %v1805 = vpop.permute.xlu0 %1804
    %1807 = vset.pattern.permute.xlu0 1
    %1808 = vperm.xlu0 %1807, %v81
    %v1809 = vpop.permute.xlu0 %1808
    %1811 = vset.pattern.permute.xlu0 1
    %1812 = vperm.xlu0 %1811, %v82
    %v1813 = vpop.permute.xlu0 %1812
    %1815 = vset.pattern.permute.xlu0 1
    %1816 = vperm.xlu0 %1815, %v83
    %v1817 = vpop.permute.xlu0 %1816
    %1819 = vset.pattern.permute.xlu0 1
    %1820 = vperm.xlu0 %1819, %v84
    %v1821 = vpop.permute.xlu0 %1820
    %1823 = vset.pattern.permute.xlu0 1
    %1824 = vperm.xlu0 %1823, %v85
    %v1825 = vpop.permute.xlu0 %1824
    %v1828 = vperm.slane %v87, 0
    %v1830 = vmax.f32 %v1573, %v1828
    %v1831 = vmax.f32 %v1577, %v1828
    %v1832 = vmax.f32 %v1581, %v1828
    %v1833 = vmax.f32 %v1585, %v1828
    %v1834 = vmax.f32 %v1589, %v1828
    %v1835 = vmax.f32 %v1593, %v1828
    %v1836 = vmax.f32 %v1597, %v1828
    %v1837 = vmax.f32 %v1601, %v1828
    %v1838 = vmax.f32 %v1605, %v1828
    %v1839 = vmax.f32 %v1609, %v1828
    %v1840 = vmax.f32 %v1613, %v1828
    %v1841 = vmax.f32 %v1617, %v1828
    %v1842 = vmax.f32 %v1621, %v1828
    %v1843 = vmax.f32 %v1625, %v1828
    %v1844 = vmax.f32 %v1629, %v1828
    %v1845 = vmax.f32 %v1633, %v1828
    %v1846 = vmax.f32 %v1637, %v1828
    %v1847 = vmax.f32 %v1641, %v1828
    %v1848 = vmax.f32 %v1645, %v1828
    %v1849 = vmax.f32 %v1649, %v1828
    %v1850 = vmax.f32 %v1653, %v1828
    %v1851 = vmax.f32 %v1657, %v1828
    %v1852 = vmax.f32 %v1661, %v1828
    %v1853 = vmax.f32 %v1665, %v1828
    %v1854 = vmax.f32 %v1669, %v1828
    %v1855 = vmax.f32 %v1673, %v1828
    %v1856 = vmax.f32 %v1677, %v1828
    %v1857 = vmax.f32 %v1681, %v1828
    %v1858 = vmax.f32 %v1685, %v1828
    %v1859 = vmax.f32 %v1689, %v1828
    %v1860 = vmax.f32 %v1693, %v1828
    %v1861 = vmax.f32 %v1697, %v1828
    %v1862 = vmax.f32 %v1701, %v1828
    %v1863 = vmax.f32 %v1705, %v1828
    %v1864 = vmax.f32 %v1709, %v1828
    %v1865 = vmax.f32 %v1713, %v1828
    %v1866 = vmax.f32 %v1717, %v1828
    %v1867 = vmax.f32 %v1721, %v1828
    %v1868 = vmax.f32 %v1725, %v1828
    %v1869 = vmax.f32 %v1729, %v1828
    %v1870 = vmax.f32 %v1733, %v1828
    %v1871 = vmax.f32 %v1737, %v1828
    %v1872 = vmax.f32 %v1741, %v1828
    %v1873 = vmax.f32 %v1745, %v1828
    %v1874 = vmax.f32 %v1749, %v1828
    %v1875 = vmax.f32 %v1753, %v1828
    %v1876 = vmax.f32 %v1757, %v1828
    %v1877 = vmax.f32 %v1761, %v1828
    %v1878 = vmax.f32 %v1765, %v1828
    %v1879 = vmax.f32 %v1769, %v1828
    %v1880 = vmax.f32 %v1773, %v1828
    %v1881 = vmax.f32 %v1777, %v1828
    %v1882 = vmax.f32 %v1781, %v1828
    %v1883 = vmax.f32 %v1785, %v1828
    %v1884 = vmax.f32 %v1789, %v1828
    %v1885 = vmax.f32 %v1793, %v1828
    %v1886 = vmax.f32 %v1797, %v1828
    %v1887 = vmax.f32 %v1801, %v1828
    %v1888 = vmax.f32 %v1805, %v1828
    %v1889 = vmax.f32 %v1809, %v1828
    %v1890 = vmax.f32 %v1813, %v1828
    %v1891 = vmax.f32 %v1817, %v1828
    %v1892 = vmax.f32 %v1821, %v1828
    %v1893 = vmax.f32 %v1825, %v1828
    %v1894 = vsub.f32 %v1507, %v1830
    %v1895 = vsub.f32 %v1508, %v1831
    %v1896 = vsub.f32 %v1509, %v1832
    %v1897 = vsub.f32 %v1510, %v1833
    %v1898 = vsub.f32 %v1511, %v1834
    %v1899 = vsub.f32 %v1512, %v1835
    %v1900 = vsub.f32 %v1513, %v1836
    %v1901 = vsub.f32 %v1514, %v1837
    %v1902 = vsub.f32 %v1515, %v1838
    %v1903 = vsub.f32 %v1516, %v1839
    %v1904 = vsub.f32 %v1517, %v1840
    %v1905 = vsub.f32 %v1518, %v1841
    %v1906 = vsub.f32 %v1519, %v1842
    %v1907 = vsub.f32 %v1520, %v1843
    %v1908 = vsub.f32 %v1521, %v1844
    %v1909 = vsub.f32 %v1522, %v1845
    %v1910 = vsub.f32 %v1523, %v1846
    %v1911 = vsub.f32 %v1524, %v1847
    %v1912 = vsub.f32 %v1525, %v1848
    %v1913 = vsub.f32 %v1526, %v1849
    %v1914 = vsub.f32 %v1527, %v1850
    %v1915 = vsub.f32 %v1528, %v1851
    %v1916 = vsub.f32 %v1529, %v1852
    %v1917 = vsub.f32 %v1530, %v1853
    %v1918 = vsub.f32 %v1531, %v1854
    %v1919 = vsub.f32 %v1532, %v1855
    %v1920 = vsub.f32 %v1533, %v1856
    %v1921 = vsub.f32 %v1534, %v1857
    %v1922 = vsub.f32 %v1535, %v1858
    %v1923 = vsub.f32 %v1536, %v1859
    %v1924 = vsub.f32 %v1537, %v1860
    %v1925 = vsub.f32 %v1538, %v1861
    %v1926 = vsub.f32 %v1539, %v1862
    %v1927 = vsub.f32 %v1540, %v1863
    %v1928 = vsub.f32 %v1541, %v1864
    %v1929 = vsub.f32 %v1542, %v1865
    %v1930 = vsub.f32 %v1543, %v1866
    %v1931 = vsub.f32 %v1544, %v1867
    %v1932 = vsub.f32 %v1545, %v1868
    %v1933 = vsub.f32 %v1546, %v1869
    %v1934 = vsub.f32 %v1547, %v1870
    %v1935 = vsub.f32 %v1548, %v1871
    %v1936 = vsub.f32 %v1549, %v1872
    %v1937 = vsub.f32 %v1550, %v1873
    %v1938 = vsub.f32 %v1551, %v1874
    %v1939 = vsub.f32 %v1552, %v1875
    %v1940 = vsub.f32 %v1553, %v1876
    %v1941 = vsub.f32 %v1554, %v1877
    %v1942 = vsub.f32 %v1555, %v1878
    %v1943 = vsub.f32 %v1556, %v1879
    %v1944 = vsub.f32 %v1557, %v1880
    %v1945 = vsub.f32 %v1558, %v1881
    %v1946 = vsub.f32 %v1559, %v1882
    %v1947 = vsub.f32 %v1560, %v1883
    %v1948 = vsub.f32 %v1561, %v1884
    %v1949 = vsub.f32 %v1562, %v1885
    %v1950 = vsub.f32 %v1563, %v1886
    %v1951 = vsub.f32 %v1564, %v1887
    %v1952 = vsub.f32 %v1565, %v1888
    %v1953 = vsub.f32 %v1566, %v1889
    %v1954 = vsub.f32 %v1567, %v1890
    %v1955 = vsub.f32 %v1568, %v1891
    %v1956 = vsub.f32 %v1569, %v1892
    %v1957 = vsub.f32 %v1570, %v1893
    %v1958 = vmax.f32 %v1894, 0.0
    %v1959 = vmax.f32 %v1895, 0.0
    %v1960 = vmax.f32 %v1896, 0.0
    %v1961 = vmax.f32 %v1897, 0.0
    %v1962 = vmax.f32 %v1898, 0.0
    %v1963 = vmax.f32 %v1899, 0.0
    %v1964 = vmax.f32 %v1900, 0.0
    %v1965 = vmax.f32 %v1901, 0.0
    %v1966 = vmax.f32 %v1902, 0.0
    %v1967 = vmax.f32 %v1903, 0.0
    %v1968 = vmax.f32 %v1904, 0.0
    %v1969 = vmax.f32 %v1905, 0.0
    %v1970 = vmax.f32 %v1906, 0.0
    %v1971 = vmax.f32 %v1907, 0.0
    %v1972 = vmax.f32 %v1908, 0.0
    %v1973 = vmax.f32 %v1909, 0.0
    %v1974 = vmax.f32 %v1910, 0.0
    %v1975 = vmax.f32 %v1911, 0.0
    %v1976 = vmax.f32 %v1912, 0.0
    %v1977 = vmax.f32 %v1913, 0.0
    %v1978 = vmax.f32 %v1914, 0.0
    %v1979 = vmax.f32 %v1915, 0.0
    %v1980 = vmax.f32 %v1916, 0.0
    %v1981 = vmax.f32 %v1917, 0.0
    %v1982 = vmax.f32 %v1918, 0.0
    %v1983 = vmax.f32 %v1919, 0.0
    %v1984 = vmax.f32 %v1920, 0.0
    %v1985 = vmax.f32 %v1921, 0.0
    %v1986 = vmax.f32 %v1922, 0.0
    %v1987 = vmax.f32 %v1923, 0.0
    %v1988 = vmax.f32 %v1924, 0.0
    %v1989 = vmax.f32 %v1925, 0.0
    %v1990 = vmax.f32 %v1926, 0.0
    %v1991 = vmax.f32 %v1927, 0.0
    %v1992 = vmax.f32 %v1928, 0.0
    %v1993 = vmax.f32 %v1929, 0.0
    %v1994 = vmax.f32 %v1930, 0.0
    %v1995 = vmax.f32 %v1931, 0.0
    %v1996 = vmax.f32 %v1932, 0.0
    %v1997 = vmax.f32 %v1933, 0.0
    %v1998 = vmax.f32 %v1934, 0.0
    %v1999 = vmax.f32 %v1935, 0.0
    %v2000 = vmax.f32 %v1936, 0.0
    %v2001 = vmax.f32 %v1937, 0.0
    %v2002 = vmax.f32 %v1938, 0.0
    %v2003 = vmax.f32 %v1939, 0.0
    %v2004 = vmax.f32 %v1940, 0.0
    %v2005 = vmax.f32 %v1941, 0.0
    %v2006 = vmax.f32 %v1942, 0.0
    %v2007 = vmax.f32 %v1943, 0.0
    %v2008 = vmax.f32 %v1944, 0.0
    %v2009 = vmax.f32 %v1945, 0.0
    %v2010 = vmax.f32 %v1946, 0.0
    %v2011 = vmax.f32 %v1947, 0.0
    %v2012 = vmax.f32 %v1948, 0.0
    %v2013 = vmax.f32 %v1949, 0.0
    %v2014 = vmax.f32 %v1950, 0.0
    %v2015 = vmax.f32 %v1951, 0.0
    %v2016 = vmax.f32 %v1952, 0.0
    %v2017 = vmax.f32 %v1953, 0.0
    %v2018 = vmax.f32 %v1954, 0.0
    %v2019 = vmax.f32 %v1955, 0.0
    %v2020 = vmax.f32 %v1956, 0.0
    %v2021 = vmax.f32 %v1957, 0.0
    %v2022 = vld [vmem:[#allocation2] sm:$0xff]
    %v2023 = vld [vmem:[#allocation2 + $0x8] sm:$0xff]
    %v2024 = vpack.c.bf16 %v1184, %v1183
    %v2025 = vpack.c.bf16 %v1186, %v1185
    %v2026 = vpack.c.bf16 %v1188, %v1187
    %v2027 = vpack.c.bf16 %v1190, %v1189
    %v2028 = vpack.c.bf16 %v1192, %v1191
    %v2029 = vpack.c.bf16 %v1194, %v1193
    %v2030 = vpack.c.bf16 %v1196, %v1195
    %v2031 = vpack.c.bf16 %v1198, %v1197
    %v2032 = vpack.c.bf16 %v1200, %v1199
    %v2033 = vpack.c.bf16 %v1202, %v1201
    %v2034 = vpack.c.bf16 %v1204, %v1203
    %v2035 = vpack.c.bf16 %v1206, %v1205
    %v2036 = vpack.c.bf16 %v1208, %v1207
    %v2037 = vpack.c.bf16 %v1210, %v1209
    %v2038 = vpack.c.bf16 %v1212, %v1211
    %v2039 = vpack.c.bf16 %v1214, %v1213
    %v2040 = vpack.c.bf16 %v1216, %v1215
    %v2041 = vpack.c.bf16 %v1218, %v1217
    %v2042 = vpack.c.bf16 %v1220, %v1219
    %v2043 = vpack.c.bf16 %v1222, %v1221
    %v2044 = vpack.c.bf16 %v1224, %v1223
    %v2045 = vpack.c.bf16 %v1226, %v1225
    %v2046 = vpack.c.bf16 %v1228, %v1227
    %v2047 = vpack.c.bf16 %v1230, %v1229
    %v2048 = vpack.c.bf16 %v1232, %v1231
    %v2049 = vpack.c.bf16 %v1234, %v1233
    %v2050 = vpack.c.bf16 %v1236, %v1235
    %v2051 = vpack.c.bf16 %v1238, %v1237
    %v2052 = vpack.c.bf16 %v1240, %v1239
    %v2053 = vpack.c.bf16 %v1242, %v1241
    %v2054 = vpack.c.bf16 %v1244, %v1243
    %v2055 = vpack.c.bf16 %v1246, %v1245
    %v2056 = vpack.c.bf16 %v1959, %v1958
    %v2057 = vpack.c.bf16 %v1961, %v1960
    %v2058 = vpack.c.bf16 %v1963, %v1962
    %v2059 = vpack.c.bf16 %v1965, %v1964
    %v2060 = vpack.c.bf16 %v1967, %v1966
    %v2061 = vpack.c.bf16 %v1969, %v1968
    %v2062 = vpack.c.bf16 %v1971, %v1970
    %v2063 = vpack.c.bf16 %v1973, %v1972
    %v2064 = vpack.c.bf16 %v1975, %v1974
    %v2065 = vpack.c.bf16 %v1977, %v1976
    %v2066 = vpack.c.bf16 %v1979, %v1978
    %v2067 = vpack.c.bf16 %v1981, %v1980
    %v2068 = vpack.c.bf16 %v1983, %v1982
    %v2069 = vpack.c.bf16 %v1985, %v1984
    %v2070 = vpack.c.bf16 %v1987, %v1986
    %v2071 = vpack.c.bf16 %v1989, %v1988
    %v2072 = vpack.c.bf16 %v1991, %v1990
    %v2073 = vpack.c.bf16 %v1993, %v1992
    %v2074 = vpack.c.bf16 %v1995, %v1994
    %v2075 = vpack.c.bf16 %v1997, %v1996
    %v2076 = vpack.c.bf16 %v1999, %v1998
    %v2077 = vpack.c.bf16 %v2001, %v2000
    %v2078 = vpack.c.bf16 %v2003, %v2002
    %v2079 = vpack.c.bf16 %v2005, %v2004
    %v2080 = vpack.c.bf16 %v2007, %v2006
    %v2081 = vpack.c.bf16 %v2009, %v2008
    %v2082 = vpack.c.bf16 %v2011, %v2010
    %v2083 = vpack.c.bf16 %v2013, %v2012
    %v2084 = vpack.c.bf16 %v2015, %v2014
    %v2085 = vpack.c.bf16 %v2017, %v2016
    %v2086 = vpack.c.bf16 %v2019, %v2018
    %v2087 = vpack.c.bf16 %v2021, %v2020
    %2088 = vxpose.xlu0.c.b16.start [1/8] %v2024, 128
    %2089 = vxpose.xlu0.c.b16.cont [2/8] %v2025, 128
    %2090 = vxpose.xlu0.c.b16.cont [3/8] %v2026, 128
    %2091 = vxpose.xlu0.c.b16.cont [4/8] %v2027, 128
    %2092 = vxpose.xlu0.c.b16.cont [5/8] %v2028, 128
    %2093 = vxpose.xlu0.c.b16.cont [6/8] %v2029, 128
    %2094 = vxpose.xlu0.c.b16.cont [7/8] %v2030, 128
    %2095 = vxpose.xlu0.c.b16.end [8/8] %v2031, 128
    %v2096 = vpop.trf.xlu0
    %v2097 = vpop.trf.xlu0
    %v2098 = vpop.trf.xlu0
    %v2099 = vpop.trf.xlu0
    %v2100 = vpop.trf.xlu0
    %v2101 = vpop.trf.xlu0
    %v2102 = vpop.trf.xlu0
    %v2103 = vpop.trf.xlu0
    %2104 = vxpose.xlu0.c.b16.start [1/8] %v2032, 128
    %2105 = vxpose.xlu0.c.b16.cont [2/8] %v2033, 128
    %2106 = vxpose.xlu0.c.b16.cont [3/8] %v2034, 128
    %2107 = vxpose.xlu0.c.b16.cont [4/8] %v2035, 128
    %2108 = vxpose.xlu0.c.b16.cont [5/8] %v2036, 128
    %2109 = vxpose.xlu0.c.b16.cont [6/8] %v2037, 128
    %2110 = vxpose.xlu0.c.b16.cont [7/8] %v2038, 128
    %2111 = vxpose.xlu0.c.b16.end [8/8] %v2039, 128
    %v2112 = vpop.trf.xlu0
    %v2113 = vpop.trf.xlu0
    %v2114 = vpop.trf.xlu0
    %v2115 = vpop.trf.xlu0
    %v2116 = vpop.trf.xlu0
    %v2117 = vpop.trf.xlu0
    %v2118 = vpop.trf.xlu0
    %v2119 = vpop.trf.xlu0
    %2120 = vxpose.xlu0.c.b16.start [1/8] %v2040, 128
    %2121 = vxpose.xlu0.c.b16.cont [2/8] %v2041, 128
    %2122 = vxpose.xlu0.c.b16.cont [3/8] %v2042, 128
    %2123 = vxpose.xlu0.c.b16.cont [4/8] %v2043, 128
    %2124 = vxpose.xlu0.c.b16.cont [5/8] %v2044, 128
    %2125 = vxpose.xlu0.c.b16.cont [6/8] %v2045, 128
    %2126 = vxpose.xlu0.c.b16.cont [7/8] %v2046, 128
    %2127 = vxpose.xlu0.c.b16.end [8/8] %v2047, 128
    %v2128 = vpop.trf.xlu0
    %v2129 = vpop.trf.xlu0
    %v2130 = vpop.trf.xlu0
    %v2131 = vpop.trf.xlu0
    %v2132 = vpop.trf.xlu0
    %v2133 = vpop.trf.xlu0
    %v2134 = vpop.trf.xlu0
    %v2135 = vpop.trf.xlu0
    %2136 = vxpose.xlu0.c.b16.start [1/8] %v2048, 128
    %2137 = vxpose.xlu0.c.b16.cont [2/8] %v2049, 128
    %2138 = vxpose.xlu0.c.b16.cont [3/8] %v2050, 128
    %2139 = vxpose.xlu0.c.b16.cont [4/8] %v2051, 128
    %2140 = vxpose.xlu0.c.b16.cont [5/8] %v2052, 128
    %2141 = vxpose.xlu0.c.b16.cont [6/8] %v2053, 128
    %2142 = vxpose.xlu0.c.b16.cont [7/8] %v2054, 128
    %2143 = vxpose.xlu0.c.b16.end [8/8] %v2055, 128
    %v2144 = vpop.trf.xlu0
    %v2145 = vpop.trf.xlu0
    %v2146 = vpop.trf.xlu0
    %v2147 = vpop.trf.xlu0
    %v2148 = vpop.trf.xlu0
    %v2149 = vpop.trf.xlu0
    %v2150 = vpop.trf.xlu0
    %v2151 = vpop.trf.xlu0
    %2152 = vmatpush.bf16.msra.mxu0 %v2063
    %2153 = vmatpush.bf16.msra.mxu0 %v2062
    %2154 = vmatpush.bf16.msra.mxu0 %v2061
    %2155 = vmatpush.bf16.msra.mxu0 %v2060
    %2156 = vmatpush.bf16.msra.mxu0 %v2059
    %2157 = vmatpush.bf16.msra.mxu0 %v2058
    %2158 = vmatpush.bf16.msra.mxu0 %v2057
    %2159 = vmatpush.bf16.msra.mxu0 %v2056
    %2160 = vmatmul.bf16.gmra.mxu0 %v2096
    %v2161 = vpop.f32.mrf.mxu0
    %v2162 = vadd.f32 0.0, %v2161
    %v2163 = vpop.f32.mrf.mxu0
    %v2164 = vadd.f32 0.0, %v2163
    %2165 = vdwg.mxu0
    %2166 = vmatpush.bf16.msra.mxu0 %v2071
    %2167 = vmatpush.bf16.msra.mxu0 %v2070
    %2168 = vmatpush.bf16.msra.mxu0 %v2069
    %2169 = vmatpush.bf16.msra.mxu0 %v2068
    %2170 = vmatpush.bf16.msra.mxu0 %v2067
    %2171 = vmatpush.bf16.msra.mxu0 %v2066
    %2172 = vmatpush.bf16.msra.mxu0 %v2065
    %2173 = vmatpush.bf16.msra.mxu0 %v2064
    %2174 = vmatmul.bf16.gmra.mxu0 %v2112
    %v2175 = vpop.f32.mrf.mxu0
    %v2176 = vadd.f32 %v2162, %v2175
    %v2177 = vpop.f32.mrf.mxu0
    %v2178 = vadd.f32 %v2164, %v2177
    %2179 = vdwg.mxu0
    %2180 = vmatpush.bf16.msra.mxu0 %v2079
    %2181 = vmatpush.bf16.msra.mxu0 %v2078
    %2182 = vmatpush.bf16.msra.mxu0 %v2077
    %2183 = vmatpush.bf16.msra.mxu0 %v2076
    %2184 = vmatpush.bf16.msra.mxu0 %v2075
    %2185 = vmatpush.bf16.msra.mxu0 %v2074
    %2186 = vmatpush.bf16.msra.mxu0 %v2073
    %2187 = vmatpush.bf16.msra.mxu0 %v2072
    %2188 = vmatmul.bf16.gmra.mxu0 %v2128
    %v2189 = vpop.f32.mrf.mxu0
    %v2190 = vadd.f32 %v2176, %v2189
    %v2191 = vpop.f32.mrf.mxu0
    %v2192 = vadd.f32 %v2178, %v2191
    %2193 = vdwg.mxu0
    %2194 = vmatpush.bf16.msra.mxu0 %v2087
    %2195 = vmatpush.bf16.msra.mxu0 %v2086
    %2196 = vmatpush.bf16.msra.mxu0 %v2085
    %2197 = vmatpush.bf16.msra.mxu0 %v2084
    %2198 = vmatpush.bf16.msra.mxu0 %v2083
    %2199 = vmatpush.bf16.msra.mxu0 %v2082
    %2200 = vmatpush.bf16.msra.mxu0 %v2081
    %2201 = vmatpush.bf16.msra.mxu0 %v2080
    %2202 = vmatmul.bf16.gmra.mxu0 %v2144
    %v2203 = vpop.f32.mrf.mxu0
    %v2204 = vadd.f32 %v2190, %v2203
    %v2205 = vpop.f32.mrf.mxu0
    %v2206 = vadd.f32 %v2192, %v2205
    %2207 = vdwg.mxu0
    %v2208 = vadd.f32 %v2022, %v2204
    %v2209 = vadd.f32 %v2023, %v2206
    %vm2210 = vcmask 130048
    %2211 = vst.msk [vmem:[#allocation2] sm:$0xff] %vm2210, %v2208
    %2212 = vst.msk [vmem:[#allocation2 + $0x8] sm:$0xff] %vm2210, %v2209
    // Predicated region
    $region18: #{tpu_custom_call.1} parent=1 // pred_check
      _
    $region19: #{tpu_custom_call.1} parent=1 // pred_check_branch
      %2214 = sbr.rel (0) target = $region21
    $region20: #{tpu_custom_call.1} parent=1 // pred_region
      %2216 = vsyncadd [#allocation3], 0
      %s2217 = sshll.u32 [#allocation2], 4
      %s2218 = int_to_ptr.vmem [resolvable:$true] %s2217
      %s2219 = sshll.u32 %s3, 4
      %s2220 = int_to_ptr.hbm [resolvable:$true] %s2219
      %2225 = dma.vmem_to_hbm [thread:$0]  %s2218, 256, %s2220, [#allocation3], 128, 128, 8
    $region21: #{tpu_custom_call.1} parent=1 // pred_fallthru
      _
    // Predicated region
    $region22: #{tpu_custom_call.1} parent=1 // pred_check
      _
    $region23: #{tpu_custom_call.1} parent=1 // pred_check_branch
      %2227 = sbr.rel (0) target = $region25
    $region24: #{tpu_custom_call.1} parent=1 // pred_region
      %2229 = dma.done [#allocation3], 256
    $region25: #{tpu_custom_call.1} parent=1 // pred_fallthru
      _
    %2230 = vsyncpa [#allocation3], 1

</llo_original>
